<compile_context>
chip_gen: v6e
topology: v6e:2x2x1
jax: 0.10.0
libtpu: 0.0.40
codegen_flags: <defaults>
</compile_context>

<pallas_src>
import functools

import jax
import jax.numpy as jnp
from jax.experimental import pallas as pl
from jax.experimental.pallas import tpu as pltpu

_LANE = 128   # vreg lane width: feature dims padded to multiples of this
_TM = 256     # A_hat row-tile height


def _round_up(x, m):
    return (x + m - 1) // m * m


def _pad2d(a, rows, cols):
    return jnp.pad(a, ((0, rows - a.shape[0]), (0, cols - a.shape[1])))


# ----------------------------------------------------------------------------
# Fused Pallas kernel: gnn1 propagation -> ReLU -> gnn2 transform+propagation
# ----------------------------------------------------------------------------
def _fused_gnn_kernel(a_hbm, h0_hbm, w2_ref, b2_ref, o_ref,
                      a_vmem, h_scr, ah0_scr, dma_sem, *, K, alpha, tm):
    l = pl.program_id(0)          # layer index (0: gnn1, 1: gnn2)
    k = pl.program_id(1)          # propagation step
    i = pl.program_id(2)          # A_hat row-tile index

    # --- one-time priming (first grid step): make A resident, load h0_1 ---
    @pl.when((l == 0) & (k == 0) & (i == 0))
    def _():
        cp_a = pltpu.make_async_copy(a_hbm, a_vmem, dma_sem.at[0])
        cp_h = pltpu.make_async_copy(h0_hbm, h_scr.at[1], dma_sem.at[1])
        cp_a.start()
        cp_h.start()
        cp_h.wait()
        cp_a.wait()
        ah0_scr[...] = alpha * h_scr[1].astype(jnp.float32)

    # --- layer boundary: ReLU(h1), then h0_2 = relu(h1) @ W2 + b2 ---------
    @pl.when((l == 1) & (k == 0) & (i == 0))
    def _():
        h1 = jnp.maximum(h_scr[(K - 1) % 2], 0)     # final layer-1 state, ReLU
        h0_2 = (jnp.dot(h1, w2_ref[...], preferred_element_type=jnp.float32)
                + b2_ref[...])
        h_scr[1] = h0_2.astype(h_scr.dtype)         # "previous h" for k == 0
        ah0_scr[...] = alpha * h0_2

    # --- one propagation step for this row tile ---------------------------
    prev = 1 - (k % 2)
    cur = k % 2
    row0 = pl.multiple_of(i * tm, tm)

    # a_vmem is pre-scaled by (1 - alpha) in the wrapper, so the body is one
    # MXU matmul + one VPU add; accumulation in f32.
    a_tile = a_vmem[pl.ds(row0, tm), :]
    new_tile = (jnp.dot(a_tile, h_scr[prev], preferred_element_type=jnp.float32)
                + ah0_scr[pl.ds(row0, tm), :])
    h_scr[cur, pl.ds(row0, tm), :] = new_tile.astype(h_scr.dtype)

    # Output block is VMEM-resident (constant-index out_spec): write it only
    # on the final step of the final layer -> exactly one HBM writeback.
    @pl.when((l == 1) & (k == K - 1))
    def _():
        o_ref[pl.ds(row0, tm), :] = new_tile.astype(o_ref.dtype)


# ----------------------------------------------------------------------------
# Model wrapper: pad, hoist invariants, single fused pallas_call
# ----------------------------------------------------------------------------
def model_forward(params, x, a_hat, *, K, alpha, num_nodes, output_num,
                  tm=_TM, lane=_LANE):
    assert K >= 1
    hidden = params["w1"].shape[1]
    out_dim = params["w2"].shape[1]

    n_pad = _round_up(max(num_nodes, tm), tm)
    d_max = _round_up(max(hidden, out_dim, lane), lane)
    n_tiles = n_pad // tm

    # Hoisted once for both layers and all K steps: pad, (1-alpha)-scale, bf16.
    a_scaled = _pad2d((1.0 - alpha) * a_hat, n_pad, n_pad).astype(jnp.bfloat16)

    # Layer-1 transform hoisted out of the kernel (plain XLA matmul, f32).
    # Padding rows/cols of h0_1 are exactly zero, so the padding region stays
    # zero through propagation (padded columns of A are zero as well).
    h0_1 = x.astype(jnp.float32) @ params["w1"] + params["b1"]
    h0_1 = _pad2d(h0_1, n_pad, d_max).astype(jnp.bfloat16)

    w2 = _pad2d(params["w2"], d_max, d_max).astype(jnp.bfloat16)
    b2 = _pad2d(params["b2"], 1, d_max).astype(jnp.float32)

    # Per-generation VMEM budget: 7/8 of physical (v7x: ~56 MiB, v6e: ~112 MiB).
    try:
        vmem_cap = int(pltpu.get_tpu_info().vmem_capacity_bytes)
    except Exception:
        vmem_cap = 64 * 1024 * 1024
    vmem_limit = vmem_cap * 7 // 8

    footprint = (n_pad * n_pad * 2              # resident (1-alpha)*A_hat, bf16
                 + 2 * n_pad * d_max * 2        # ping-pong h_k, bf16
                 + n_pad * d_max * 4            # alpha * h0, f32
                 + 2 * n_pad * d_max * 4        # output block (x2 buffering)
                 + 2 * (d_max * d_max * 2 + d_max * 4))   # W2, b2 (x2 buffering)
    if footprint + (2 << 20) > vmem_limit:
        # TODO(synk): streamed / block-sparse A path for large graphs.
        raise NotImplementedError(
            f"dense A_hat ({footprint/2**20:.1f} MiB footprint) does not fit "
            f"the VMEM budget ({vmem_limit/2**20:.1f} MiB)")

    kernel = functools.partial(_fused_gnn_kernel, K=K, alpha=float(alpha), tm=tm)

    flops = (2 * K * 2 * n_pad * n_pad * d_max      # 2 layers x K propagation steps
             + 2 * n_pad * d_max * d_max)           # in-kernel layer-2 transform
    bytes_accessed = (n_pad * n_pad * 2             # A read once
                      + n_pad * d_max * 2           # h0_1 read once
                      + d_max * d_max * 2 + d_max * 4
                      + n_pad * d_max * 4)          # single output writeback

    out = pl.pallas_call(
        kernel,
        out_shape=jax.ShapeDtypeStruct((n_pad, d_max), jnp.float32),
        grid=(2, K, n_tiles),
        in_specs=[
            # A and h0_1 stay in HBM; the kernel DMAs each exactly once.
            pl.BlockSpec(memory_space=pl.ANY),
            pl.BlockSpec(memory_space=pl.ANY),
            # Small layer-2 weights resident via constant-index BlockSpecs.
            pl.BlockSpec((d_max, d_max), lambda l, k, i: (0, 0)),
            pl.BlockSpec((1, d_max), lambda l, k, i: (0, 0)),
        ],
        # Constant-index, full-array output block: VMEM-resident, flushed once.
        out_specs=pl.BlockSpec((n_pad, d_max), lambda l, k, i: (0, 0)),
        scratch_shapes=[
            pltpu.VMEM((n_pad, n_pad), jnp.bfloat16),     # resident scaled A_hat
            pltpu.VMEM((2, n_pad, d_max), jnp.bfloat16),  # ping-pong h_k
            pltpu.VMEM((n_pad, d_max), jnp.float32),      # alpha * h0
            pltpu.SemaphoreType.DMA((2,)),
        ],
        compiler_params=pltpu.CompilerParams(
            # Every row tile of step k reads the full h of step k-1 from shared
            # VMEM scratch, so no axis may be megacore-parallel.
            dimension_semantics=("arbitrary", "arbitrary", "arbitrary"),
            vmem_limit_bytes=int(vmem_limit),
        ),
        cost_estimate=pl.CostEstimate(flops=int(flops), transcendentals=0,
                                      bytes_accessed=int(bytes_accessed)),
    )(a_scaled, h0_1, w2, b2)

    return out[:num_nodes, :output_num]


# ----------------------------------------------------------------------------
# Glue: dense normalized adjacency from edge_index, deterministic params
# ----------------------------------------------------------------------------
def build_a_hat(edge_index, num_nodes):
    src, dst = edge_index[0], edge_index[1]
    a = jnp.zeros((num_nodes, num_nodes), jnp.float32)
    a = a.at[dst, src].set(1.0)
    idx = jnp.arange(num_nodes)
    a = a.at[idx, idx].set(1.0)          # self loops via set (no double count)
    deg = jnp.sum(a, axis=1, keepdims=True)
    return a / deg                        # row-normalized (mean aggregation)


def init_params(key, feature_num, first_layer_dimension, heads, output_num):
    k1, k2 = jax.random.split(key)
    hidden = first_layer_dimension * heads
    scale1 = 1.0 / jnp.sqrt(jnp.float32(feature_num))
    scale2 = 1.0 / jnp.sqrt(jnp.float32(hidden))
    return {
        "w1": scale1 * jax.random.normal(k1, (feature_num, hidden), jnp.float32),
        "b1": jnp.zeros((1, hidden), jnp.float32),
        "w2": scale2 * jax.random.normal(k2, (hidden, output_num), jnp.float32),
        "b2": jnp.zeros((1, output_num), jnp.float32),
    }


if __name__ == "__main__":
    # Small deterministic config (stand-ins for the argparse hyper-parameters)
    N = 16
    feature_num = 8
    first_layer_dimension = 8
    heads = 2
    output_num = 4
    K = 3
    alpha = 0.1

    key = jax.random.PRNGKey(0)
    kx, kp = jax.random.split(key)

    x = jax.random.normal(kx, (N, feature_num), jnp.float32)

    # Deterministic ring graph (bidirectional edges)
    idx = jnp.arange(N)
    src = jnp.concatenate([idx, (idx + 1) % N])
    dst = jnp.concatenate([(idx + 1) % N, idx])
    edge_index = jnp.stack([src, dst])

    a_hat = build_a_hat(edge_index, N)
    params = init_params(kp, feature_num, first_layer_dimension, heads, output_num)

    fwd = jax.jit(functools.partial(model_forward, K=K, alpha=alpha,
                                    num_nodes=N, output_num=output_num))
    out = fwd(params, x, a_hat)
    jax.block_until_ready(out)

    # Pure-JAX f32 reference (relaxed tolerance: kernel uses bf16 MXU operands
    # and bf16 h_k between propagation steps).
    def ref_layer(h_in, w, b):
        h0 = h_in @ w + b
        h = h0
        for _ in range(K):
            h = (1.0 - alpha) * (a_hat @ h) + alpha * h0
        return h

    ref = ref_layer(jax.nn.relu(ref_layer(x, params["w1"], params["b1"])),
                    params["w2"], params["b2"])

    assert out.shape == (N, output_num), out.shape
    assert bool(jnp.all(jnp.isfinite(out)))
    max_err = float(jnp.max(jnp.abs(out - ref)))
    assert max_err < 0.25, f"max abs err vs f32 reference: {max_err}"
    print("KERNEL_OK")
</pallas_src>

<mosaic_0001>
module attributes {stable_mosaic.version = 11 : i64} {
  func.func @_fused_gnn_kernel(%arg0: i32, %arg1: i32, %arg2: i32, %arg3: memref<256x256xbf16, #tpu.memory_space<any>>, %arg4: memref<256x128xbf16, #tpu.memory_space<any>>, %arg5: memref<128x128xbf16, #tpu.memory_space<vmem>>, %arg6: memref<1x128xf32, #tpu.memory_space<vmem>>, %arg7: memref<256x128xf32, #tpu.memory_space<vmem>>, %arg8: memref<256x256xbf16, #tpu.memory_space<vmem>>, %arg9: memref<2x256x128xbf16, #tpu.memory_space<vmem>>, %arg10: memref<256x128xf32, #tpu.memory_space<vmem>>, %arg11: memref<2x!tpu.dma_semaphore, #tpu.memory_space<semaphore_mem>>) attributes {dimension_semantics = [#tpu.dimension_semantics<arbitrary>, #tpu.dimension_semantics<arbitrary>, #tpu.dimension_semantics<arbitrary>], iteration_bounds = array<i64: 2, 3, 1>, scalar_prefetch = 0 : i64, scratch_operands = 4 : i64, tpu.core_type = #tpu.core_type<tc>, window_params = [{}, {}, {pipeline_mode = #tpu.pipeline_mode<synchronous>, transform_indices = @transform_2, window_bounds = array<i64: 128, 128>}, {pipeline_mode = #tpu.pipeline_mode<synchronous>, transform_indices = @transform_3, window_bounds = array<i64: 1, 128>}, {pipeline_mode = #tpu.pipeline_mode<synchronous>, transform_indices = @transform_4, window_bounds = array<i64: 256, 128>}]} {
    %c0_i32 = arith.constant 0 : i32
    %0 = arith.cmpi eq, %arg0, %c0_i32 : i32
    %c0_i32_0 = arith.constant 0 : i32
    %1 = arith.cmpi eq, %arg1, %c0_i32_0 : i32
    %2 = arith.andi %0, %1 : i1
    %c0_i32_1 = arith.constant 0 : i32
    %3 = arith.cmpi eq, %arg2, %c0_i32_1 : i32
    %4 = arith.andi %2, %3 : i1
    %5 = arith.extui %4 : i1 to i32
    %c0_i32_2 = arith.constant 0 : i32
    %6 = arith.cmpi ne, %5, %c0_i32_2 : i32
    scf.if %6 {
      %c0_i32_25 = arith.constant 0 : i32
      %57 = tpu.memref_slice %arg11[%c0_i32_25] : memref<2x!tpu.dma_semaphore, #tpu.memory_space<semaphore_mem>> -> memref<1x!tpu.dma_semaphore, #tpu.memory_space<semaphore_mem>>
      %58 = tpu.memref_squeeze %57 : memref<1x!tpu.dma_semaphore, #tpu.memory_space<semaphore_mem>> -> memref<!tpu.dma_semaphore, #tpu.memory_space<semaphore_mem>>
      tpu.enqueue_dma source(%arg3 : memref<256x256xbf16, #tpu.memory_space<any>>) target(%arg8 : memref<256x256xbf16, #tpu.memory_space<vmem>>) target_semaphore(%58 : memref<!tpu.dma_semaphore, #tpu.memory_space<semaphore_mem>>)
      %c1_i32_26 = arith.constant 1 : i32
      %c1_i32_27 = arith.constant 1 : i32
      %c0_i32_28 = arith.constant 0 : i32
      %c0_i32_29 = arith.constant 0 : i32
      %59 = tpu.memref_slice %arg9[%c1_i32_26, %c0_i32_28, %c0_i32_29] : memref<2x256x128xbf16, #tpu.memory_space<vmem>> -> memref<1x256x128xbf16, #tpu.memory_space<vmem>>
      %60 = tpu.memref_squeeze %59 : memref<1x256x128xbf16, #tpu.memory_space<vmem>> -> memref<256x128xbf16, #tpu.memory_space<vmem>>
      %61 = tpu.memref_slice %arg11[%c1_i32_27] : memref<2x!tpu.dma_semaphore, #tpu.memory_space<semaphore_mem>> -> memref<1x!tpu.dma_semaphore, #tpu.memory_space<semaphore_mem>>
      %62 = tpu.memref_squeeze %61 : memref<1x!tpu.dma_semaphore, #tpu.memory_space<semaphore_mem>> -> memref<!tpu.dma_semaphore, #tpu.memory_space<semaphore_mem>>
      tpu.enqueue_dma source(%arg4 : memref<256x128xbf16, #tpu.memory_space<any>>) target(%60 : memref<256x128xbf16, #tpu.memory_space<vmem>>) target_semaphore(%62 : memref<!tpu.dma_semaphore, #tpu.memory_space<semaphore_mem>>)
      %c1_i32_30 = arith.constant 1 : i32
      %c1_i32_31 = arith.constant 1 : i32
      %c0_i32_32 = arith.constant 0 : i32
      %c0_i32_33 = arith.constant 0 : i32
      %63 = tpu.memref_slice %arg9[%c1_i32_30, %c0_i32_32, %c0_i32_33] : memref<2x256x128xbf16, #tpu.memory_space<vmem>> -> memref<1x256x128xbf16, #tpu.memory_space<vmem>>
      %64 = tpu.memref_squeeze %63 : memref<1x256x128xbf16, #tpu.memory_space<vmem>> -> memref<256x128xbf16, #tpu.memory_space<vmem>>
      %65 = tpu.memref_slice %arg11[%c1_i32_31] : memref<2x!tpu.dma_semaphore, #tpu.memory_space<semaphore_mem>> -> memref<1x!tpu.dma_semaphore, #tpu.memory_space<semaphore_mem>>
      %66 = tpu.memref_squeeze %65 : memref<1x!tpu.dma_semaphore, #tpu.memory_space<semaphore_mem>> -> memref<!tpu.dma_semaphore, #tpu.memory_space<semaphore_mem>>
      tpu.wait_dma2 semaphore(%66 : memref<!tpu.dma_semaphore, #tpu.memory_space<semaphore_mem>>) src(%arg4 : memref<256x128xbf16, #tpu.memory_space<any>>) dst(%64 : memref<256x128xbf16, #tpu.memory_space<vmem>>)
      %c0_i32_34 = arith.constant 0 : i32
      %67 = tpu.memref_slice %arg11[%c0_i32_34] : memref<2x!tpu.dma_semaphore, #tpu.memory_space<semaphore_mem>> -> memref<1x!tpu.dma_semaphore, #tpu.memory_space<semaphore_mem>>
      %68 = tpu.memref_squeeze %67 : memref<1x!tpu.dma_semaphore, #tpu.memory_space<semaphore_mem>> -> memref<!tpu.dma_semaphore, #tpu.memory_space<semaphore_mem>>
      tpu.wait_dma2 semaphore(%68 : memref<!tpu.dma_semaphore, #tpu.memory_space<semaphore_mem>>) src(%arg3 : memref<256x256xbf16, #tpu.memory_space<any>>) dst(%arg8 : memref<256x256xbf16, #tpu.memory_space<vmem>>)
      %c1 = arith.constant 1 : index
      %c0_35 = arith.constant 0 : index
      %c0_36 = arith.constant 0 : index
      %69 = vector.load %arg9[%c1, %c0_35, %c0_36] : memref<2x256x128xbf16, #tpu.memory_space<vmem>>, vector<1x256x128xbf16>
      %70 = vector.shape_cast %69 : vector<1x256x128xbf16> to vector<256x128xbf16>
      %71 = arith.extf %70 : vector<256x128xbf16> to vector<256x128xf32>
      %cst_37 = arith.constant 1.000000e-01 : f32
      %72 = vector.broadcast %cst_37 : f32 to vector<256x128xf32>
      %73 = arith.mulf %72, %71 : vector<256x128xf32>
      %c0_38 = arith.constant 0 : index
      %c0_39 = arith.constant 0 : index
      %74 = vector.load %arg10[%c0_38, %c0_39] : memref<256x128xf32, #tpu.memory_space<vmem>>, vector<256x128xf32>
      tpu.vector_store %arg10[%c0_38, %c0_39], %73 {strides = array<i32>} : memref<256x128xf32, #tpu.memory_space<vmem>>, vector<256x128xf32>,
    } else {
    }
    %c1_i32 = arith.constant 1 : i32
    %7 = arith.cmpi eq, %arg0, %c1_i32 : i32
    %c0_i32_3 = arith.constant 0 : i32
    %8 = arith.cmpi eq, %arg1, %c0_i32_3 : i32
    %9 = arith.andi %7, %8 : i1
    %c0_i32_4 = arith.constant 0 : i32
    %10 = arith.cmpi eq, %arg2, %c0_i32_4 : i32
    %11 = arith.andi %9, %10 : i1
    %12 = arith.extui %11 : i1 to i32
    %c0_i32_5 = arith.constant 0 : i32
    %13 = arith.cmpi ne, %12, %c0_i32_5 : i32
    scf.if %13 {
      %c0_25 = arith.constant 0 : index
      %c0_26 = arith.constant 0 : index
      %c0_27 = arith.constant 0 : index
      %57 = vector.load %arg9[%c0_25, %c0_26, %c0_27] : memref<2x256x128xbf16, #tpu.memory_space<vmem>>, vector<1x256x128xbf16>
      %58 = vector.shape_cast %57 : vector<1x256x128xbf16> to vector<256x128xbf16>
      %cst_28 = arith.constant 0.000000e+00 : bf16
      %59 = vector.broadcast %cst_28 : bf16 to vector<256x128xbf16>
      %60 = arith.maximumf %58, %59 : vector<256x128xbf16>
      %c0_29 = arith.constant 0 : index
      %c0_30 = arith.constant 0 : index
      %61 = vector.load %arg5[%c0_29, %c0_30] : memref<128x128xbf16, #tpu.memory_space<vmem>>, vector<128x128xbf16>
      %cst_31 = arith.constant dense<0.000000e+00> : vector<256x128xf32>
      %62 = tpu.matmul %60, %61, %cst_31 {dimension_numbers = #tpu.dot_dimension_numbers<[1], [0], [0], [1], [0, 0, 1, 1], [], []>} : vector<256x128xbf16>, vector<128x128xbf16>, vector<256x128xf32> -> vector<256x128xf32>
      %c0_32 = arith.constant 0 : index
      %c0_33 = arith.constant 0 : index
      %63 = vector.load %arg6[%c0_32, %c0_33] : memref<1x128xf32, #tpu.memory_space<vmem>>, vector<1x128xf32>
      %64 = vector.broadcast %63 : vector<1x128xf32> to vector<256x128xf32>
      %65 = arith.addf %62, %64 : vector<256x128xf32>
      %66 = arith.truncf %65 : vector<256x128xf32> to vector<256x128xbf16>
      %c1 = arith.constant 1 : index
      %c0_34 = arith.constant 0 : index
      %c0_35 = arith.constant 0 : index
      %67 = vector.load %arg9[%c1, %c0_34, %c0_35] : memref<2x256x128xbf16, #tpu.memory_space<vmem>>, vector<1x256x128xbf16>
      %68 = vector.shape_cast %67 : vector<1x256x128xbf16> to vector<256x128xbf16>
      %69 = vector.shape_cast %66 : vector<256x128xbf16> to vector<1x256x128xbf16>
      tpu.vector_store %arg9[%c1, %c0_34, %c0_35], %69 {strides = array<i32>} : memref<2x256x128xbf16, #tpu.memory_space<vmem>>, vector<1x256x128xbf16>,
      %cst_36 = arith.constant 1.000000e-01 : f32
      %70 = vector.broadcast %cst_36 : f32 to vector<256x128xf32>
      %71 = arith.mulf %70, %65 : vector<256x128xf32>
      %c0_37 = arith.constant 0 : index
      %c0_38 = arith.constant 0 : index
      %72 = vector.load %arg10[%c0_37, %c0_38] : memref<256x128xf32, #tpu.memory_space<vmem>>, vector<256x128xf32>
      tpu.vector_store %arg10[%c0_37, %c0_38], %71 {strides = array<i32>} : memref<256x128xf32, #tpu.memory_space<vmem>>, vector<256x128xf32>,
    } else {
    }
    %c2_i32 = arith.constant 2 : i32
    %c0_i32_6 = arith.constant 0 : i32
    %14 = arith.cmpi eq, %c2_i32, %c0_i32_6 : i32
    %c1_i32_7 = arith.constant 1 : i32
    %15 = arith.select %14, %c1_i32_7, %c2_i32 : i32
    %16 = arith.remsi %arg1, %15 : i32
    %c0_i32_8 = arith.constant 0 : i32
    %17 = arith.cmpi ne, %16, %c0_i32_8 : i32
    %c0_i32_9 = arith.constant 0 : i32
    %18 = arith.cmpi slt, %16, %c0_i32_9 : i32
    %c0_i32_10 = arith.constant 0 : i32
    %19 = arith.cmpi slt, %15, %c0_i32_10 : i32
    %20 = arith.xori %18, %19 : i1
    %21 = arith.andi %20, %17 : i1
    %22 = arith.addi %16, %15 : i32
    %23 = arith.select %21, %22, %16 : i32
    %c1_i32_11 = arith.constant 1 : i32
    %24 = arith.subi %c1_i32_11, %23 : i32
    %c2_i32_12 = arith.constant 2 : i32
    %c0_i32_13 = arith.constant 0 : i32
    %25 = arith.cmpi eq, %c2_i32_12, %c0_i32_13 : i32
    %c1_i32_14 = arith.constant 1 : i32
    %26 = arith.select %25, %c1_i32_14, %c2_i32_12 : i32
    %27 = arith.remsi %arg1, %26 : i32
    %c0_i32_15 = arith.constant 0 : i32
    %28 = arith.cmpi ne, %27, %c0_i32_15 : i32
    %c0_i32_16 = arith.constant 0 : i32
    %29 = arith.cmpi slt, %27, %c0_i32_16 : i32
    %c0_i32_17 = arith.constant 0 : i32
    %30 = arith.cmpi slt, %26, %c0_i32_17 : i32
    %31 = arith.xori %29, %30 : i1
    %32 = arith.andi %31, %28 : i1
    %33 = arith.addi %27, %26 : i32
    %34 = arith.select %32, %33, %27 : i32
    %c256_i32 = arith.constant 256 : i32
    %35 = arith.muli %arg2, %c256_i32 : i32
    %36 = tpu.assume_multiple %35, 256 : i32
    %37 = arith.index_cast %36 : i32 to index
    %c0 = arith.constant 0 : index
    %38 = vector.load %arg8[%37, %c0] : memref<256x256xbf16, #tpu.memory_space<vmem>>, vector<256x256xbf16>
    %39 = arith.index_cast %24 : i32 to index
    %c0_18 = arith.constant 0 : index
    %c0_19 = arith.constant 0 : index
    %40 = vector.load %arg9[%39, %c0_18, %c0_19] : memref<2x256x128xbf16, #tpu.memory_space<vmem>>, vector<1x256x128xbf16>
    %41 = vector.shape_cast %40 : vector<1x256x128xbf16> to vector<256x128xbf16>
    %cst = arith.constant dense<0.000000e+00> : vector<256x128xf32>
    %42 = tpu.matmul %38, %41, %cst {dimension_numbers = #tpu.dot_dimension_numbers<[1], [0], [0], [1], [0, 0, 1, 1], [], []>} : vector<256x256xbf16>, vector<256x128xbf16>, vector<256x128xf32> -> vector<256x128xf32>
    %43 = arith.index_cast %36 : i32 to index
    %c0_20 = arith.constant 0 : index
    %44 = vector.load %arg10[%43, %c0_20] : memref<256x128xf32, #tpu.memory_space<vmem>>, vector<256x128xf32>
    %45 = arith.addf %42, %44 : vector<256x128xf32>
    %46 = arith.truncf %45 : vector<256x128xf32> to vector<256x128xbf16>
    %47 = arith.index_cast %34 : i32 to index
    %48 = arith.index_cast %36 : i32 to index
    %c0_21 = arith.constant 0 : index
    %49 = vector.load %arg9[%47, %48, %c0_21] : memref<2x256x128xbf16, #tpu.memory_space<vmem>>, vector<1x256x128xbf16>
    %50 = vector.shape_cast %49 : vector<1x256x128xbf16> to vector<256x128xbf16>
    %51 = vector.shape_cast %46 : vector<256x128xbf16> to vector<1x256x128xbf16>
    tpu.vector_store %arg9[%47, %48, %c0_21], %51 {strides = array<i32>} : memref<2x256x128xbf16, #tpu.memory_space<vmem>>, vector<1x256x128xbf16>,
    %c1_i32_22 = arith.constant 1 : i32
    %52 = arith.cmpi eq, %arg0, %c1_i32_22 : i32
    %c2_i32_23 = arith.constant 2 : i32
    %53 = arith.cmpi eq, %arg1, %c2_i32_23 : i32
    %54 = arith.andi %52, %53 : i1
    %55 = arith.extui %54 : i1 to i32
    %c0_i32_24 = arith.constant 0 : i32
    %56 = arith.cmpi ne, %55, %c0_i32_24 : i32
    scf.if %56 {
      %57 = arith.index_cast %36 : i32 to index
      %c0_25 = arith.constant 0 : index
      %58 = vector.load %arg7[%57, %c0_25] : memref<256x128xf32, #tpu.memory_space<vmem>>, vector<256x128xf32>
      tpu.vector_store %arg7[%57, %c0_25], %45 {strides = array<i32>} : memref<256x128xf32, #tpu.memory_space<vmem>>, vector<256x128xf32>,
    } else {
    }
    return
  }
  func.func @transform_2(%arg0: i32, %arg1: i32, %arg2: i32) -> (i32, i32) {
    %c0_i32 = arith.constant 0 : i32
    %c0_i32_0 = arith.constant 0 : i32
    %c0_i32_1 = arith.constant 0 : i32
    return %c0_i32, %c0_i32_0 : i32, i32
  }
  func.func @transform_3(%arg0: i32, %arg1: i32, %arg2: i32) -> (i32, i32) {
    %c0_i32 = arith.constant 0 : i32
    %c0_i32_0 = arith.constant 0 : i32
    %c0_i32_1 = arith.constant 0 : i32
    return %c0_i32, %c0_i32_0 : i32, i32
  }
  func.func @transform_4(%arg0: i32, %arg1: i32, %arg2: i32) -> (i32, i32) {
    %c0_i32 = arith.constant 0 : i32
    %c0_i32_0 = arith.constant 0 : i32
    %c0_i32_1 = arith.constant 0 : i32
    return %c0_i32, %c0_i32_0 : i32, i32
  }
}

</mosaic_0001>

<llo_original>
// kernel: model_forward.1
$region0: #{model_forward.1}
  #allocation0 [shape = 'u32[]', space=smem, size = 0x4, offset = 0x4, fixed_abs, tag = 'smem constant byte address 0x4 - core index']
  #allocation1 [shape = 'u32[144,128]{1,0:T(1,128)}', space=vmem, size = 0x12000, scoped, tag = 'internal scratch']
  #allocation2 [shape = 'bf16[256,256]{1,0:T(8,128)(2,1)}', space=vmem, size = 0x20000, scoped, tag = 'scratch operand']
  #allocation3 [shape = 'bf16[2,256,128]{2,1,0:T(8,128)(2,1)}', space=vmem, size = 0x20000, scoped, tag = 'scratch operand']
  #allocation4 [shape = 'f32[256,128]{1,0:T(8,128)}', space=vmem, size = 0x20000, scoped, tag = 'scratch operand']
  #allocation5 [shape = 's32[2]{0}', space=sflag, size = 0x8, scoped, tag = 'scratch operand']
  #allocation6 [shape = 's32[]', space=sflag, size = 0x4, offset = 0, fixed_abs, tag = 'sflag constant byte address 0x0 - dummy sync flag']
  #allocation7 [shape = 's32[]', space=sflag, size = 0x4, offset = 0, fixed_abs, tag = 'sflag constant byte address 0x0 - dummy sync flag']
  %s0 = inlined_call_operand.vmem [shape: bf16[256,256], index: 0, kind: input, shape index: {}]
  %s1 = inlined_call_operand.vmem [shape: bf16[256,128], index: 1, kind: input, shape index: {}]
  %s2 = inlined_call_operand.vmem [shape: bf16[128,128], index: 2, kind: input, shape index: {}]
  %s3 = inlined_call_operand.vmem [shape: f32[1,128], index: 3, kind: input, shape index: {}]
  %s4 = inlined_call_operand.vmem [shape: f32[256,128], index: 4, kind: output, shape index: {}]
  %s5 = sld [smem:[#allocation0]]
  $region121: #{model_forward.1} parent=0
    _
  %s7 = ssub.s32 1, %s5
  %s8 = scalar_select 0, %s7, %s5
  loop: start=0, step=1, limit=8
  $region2: #{model_forward.1} parent=0 // loop_pre_header
    _
  $region3: #{model_forward.1} parent=0 // loop_header
    %s10 = sphi 0, %s14
    %p11 = scmp.ge.s32.totalorder %s10, 8
    %s17 = sphi 0, %s36
    %s18 = sphi 0, %s32
    %s19 = sphi 0, %s28
    %s20 = sphi 0, %s17
    %s21 = sphi 0, %s18
    %s22 = sphi 0, %s19
    %s23 = sphi 0, %s20
    %s24 = sphi 0, %s21
    %s25 = sphi 0, %s22
    %s37 = sphi 0, %s37
    %s39 = sphi 0, %s37
    %s40 = sphi 0, %s39
    %s54 = sphi 0, %s40
    %s58 = sphi 0, %s58
    %s60 = sphi 0, %s58
    %s61 = sphi 0, %s60
    %s75 = sphi 0, %s61
    %s79 = sphi 0, %s79
    %s81 = sphi 0, %s79
    %s82 = sphi 0, %s81
    %s96 = sphi 0, %s82
  $region4: #{model_forward.1} parent=0 // loop_header_branch
    %13 = sbr.rel (%p11) target = $region8
  $region5: #{model_forward.1} parent=0 // loop_body
    %s15 = ssub.s32 %s10, 1
    %s16 = ssub.s32 %s10, 2
    %s26 = sadd.s32 1, %s19
    %p27 = scmp.ge.s32.totalorder %s26, 1
    %s28 = scalar_select %p27, 0, %s26
    %s29 = sadd.s32 1, %s18
    %s30 = scalar_select %p27, %s29, %s18
    %p31 = scmp.ge.s32.totalorder %s30, 3
    %s32 = scalar_select %p31, 0, %s30
    %s33 = sadd.s32 1, %s17
    %s34 = scalar_select %p31, %s33, %s17
    %p35 = scmp.ge.s32.totalorder %s34, 2
    %s36 = scalar_select %p35, 0, %s34
    %s38 = sadd.s32 %s37, 1
    %p41 = scmp.eq.s32.totalorder %s10, 5
    %p42 = scmp.ne.s32.totalorder %s37, %s39
    %p43 = scmp.eq.s32.totalorder %s10, 0
    %p44 = por %p42, %p43
    %p45 = scmp.ne.s32.totalorder %s37, %s39
    %p46 = scmp.eq.s32.totalorder %s15, 5
    %p47 = por %p45, %p46
    %p48 = scmp.ne.s32.totalorder %s39, %s40
    %p49 = scmp.eq.s32.totalorder %s15, 0
    %p50 = por %p48, %p49
    %p51 = scmp.ne.s32.totalorder %s39, %s40
    %p52 = scmp.eq.s32.totalorder %s16, 5
    %p53 = por %p51, %p52
    %p55 = scmp.ne.s32.totalorder %s40, %s54
    %p56 = scmp.eq.s32.totalorder %s16, 0
    %p57 = por %p55, %p56
    %s59 = sadd.s32 %s58, 1
    %p62 = scmp.eq.s32.totalorder %s10, 5
    %p63 = scmp.ne.s32.totalorder %s58, %s60
    %p64 = scmp.eq.s32.totalorder %s10, 0
    %p65 = por %p63, %p64
    %p66 = scmp.ne.s32.totalorder %s58, %s60
    %p67 = scmp.eq.s32.totalorder %s15, 5
    %p68 = por %p66, %p67
    %p69 = scmp.ne.s32.totalorder %s60, %s61
    %p70 = scmp.eq.s32.totalorder %s15, 0
    %p71 = por %p69, %p70
    %p72 = scmp.ne.s32.totalorder %s60, %s61
    %p73 = scmp.eq.s32.totalorder %s16, 5
    %p74 = por %p72, %p73
    %p76 = scmp.ne.s32.totalorder %s61, %s75
    %p77 = scmp.eq.s32.totalorder %s16, 0
    %p78 = por %p76, %p77
    %s80 = sadd.s32 %s79, 1
    %p83 = scmp.eq.s32.totalorder %s10, 5
    %p84 = scmp.ne.s32.totalorder %s79, %s81
    %p85 = scmp.eq.s32.totalorder %s10, 0
    %p86 = por %p84, %p85
    %p87 = scmp.ne.s32.totalorder %s79, %s81
    %p88 = scmp.eq.s32.totalorder %s15, 5
    %p89 = por %p87, %p88
    %p90 = scmp.ne.s32.totalorder %s81, %s82
    %p91 = scmp.eq.s32.totalorder %s15, 0
    %p92 = por %p90, %p91
    %p93 = scmp.ne.s32.totalorder %s81, %s82
    %p94 = scmp.eq.s32.totalorder %s16, 5
    %p95 = por %p93, %p94
    %p97 = scmp.ne.s32.totalorder %s82, %s96
    %p98 = scmp.eq.s32.totalorder %s16, 0
    %p99 = por %p97, %p98
    %p100 = scmp.le.s32.totalorder 1, %s10
    %p101 = scmp.lt.s32.totalorder %s10, 7
    %p102 = pnand %p100, %p101
    %p103 = pneg %p102
    // Predicated region
    $region9: #{model_forward.1} parent=5 // pred_check
      _
    $region10: #{model_forward.1} parent=5 // pred_check_branch
      %105 = sbr.rel (%p102) target = $region12
    $region11: #{model_forward.1} parent=5 // pred_region
      %s106 = ssub.s32 %s10, 1
      // Predicated region
      $region13: #{model_forward.1} parent=11 // pred_check
        %p107 = pneg %p50
      $region14: #{model_forward.1} parent=11 // pred_check_branch
        %109 = sbr.rel (%p107) target = $region16
      $region15: #{model_forward.1} parent=11 // pred_region
        _
      $region16: #{model_forward.1} parent=11 // pred_fallthru
        _
      // Predicated region
      $region17: #{model_forward.1} parent=11 // pred_check
        %p110 = pneg %p71
      $region18: #{model_forward.1} parent=11 // pred_check_branch
        %112 = sbr.rel (%p110) target = $region20
      $region19: #{model_forward.1} parent=11 // pred_region
        _
      $region20: #{model_forward.1} parent=11 // pred_fallthru
        _
    $region12: #{model_forward.1} parent=5 // pred_fallthru
      _
    %p113 = scmp.lt.s32.totalorder %s10, 6
    // Predicated region
    $region21: #{model_forward.1} parent=5 // pred_check
      %p114 = pneg %p113
    $region22: #{model_forward.1} parent=5 // pred_check_branch
      %116 = sbr.rel (%p114) target = $region24
    $region23: #{model_forward.1} parent=5 // pred_region
      _
    $region24: #{model_forward.1} parent=5 // pred_fallthru
      _
    %p117 = scmp.le.s32.totalorder 1, %s10
    %p118 = scmp.lt.s32.totalorder %s10, 7
    %p119 = pnand %p117, %p118
    %p120 = pneg %p119
    // Predicated region
    $region25: #{model_forward.1} parent=5 // pred_check
      _
    $region26: #{model_forward.1} parent=5 // pred_check_branch
      %122 = sbr.rel (%p119) target = $region28
    $region27: #{model_forward.1} parent=5 // pred_region
      %s123 = ssub.s32 %s10, 1
      %p124 = pneg %p50
      %p125 = pneg %p47
      %p126 = pneg %p71
      %p127 = pneg %p68
      %p128 = pneg %p92
      %p129 = pneg %p89
      %p131 = scmp.eq.s32.totalorder %s20, 0
      %p132 = scmp.eq.s32.totalorder %s21, 0
      %p133 = pnand %p131, %p132
      %p134 = pneg %p133
      %p135 = scmp.eq.s32.totalorder %s22, 0
      %p136 = pnand %p134, %p135
      %p137 = pneg %p136
      // Predicated region
      $region29: #{model_forward.1} parent=27 // pred_check
        _
      $region30: #{model_forward.1} parent=27 // pred_check_branch
        %139 = sbr.rel (%p136) target = $region32
      $region31: #{model_forward.1} parent=27 // pred_region
        %p141 = scmp.lt.u32.totalorder 256, 8
        %p142 = pneg %p141
        // Predicated region
        $region33: #{model_forward.1} parent=31 // pred_check
          _
        $region34: #{model_forward.1} parent=31 // pred_check_branch
          %144 = sbr.rel (%p141) target = $region36
        $region35: #{model_forward.1} parent=31 // pred_region
          %s160 = sand.u32 256, 7
          %p161 = scmp.eq.s32.totalorder %s160, 0
          // Predicated region
          $region48: #{model_forward.1} parent=35 // pred_check
            %p162 = pneg %p161
          $region49: #{model_forward.1} parent=35 // pred_check_branch
            %164 = sbr.rel (%p162) target = $region51
          $region50: #{model_forward.1} parent=35 // pred_region
            loop: start=0, step=1, limit=1
            $region52: #{model_forward.1} parent=50 // loop_pre_header
              _
            $region53: #{model_forward.1} parent=50 // loop_header
              %s166 = sphi 0, %s170
              %p167 = scmp.ge.s32.totalorder %s166, 1
              %s171 = sphi %s0, %s0
              %s172 = sphi [#allocation2], [#allocation2]
            $region54: #{model_forward.1} parent=50 // loop_header_branch
              %169 = sbr.rel (%p167) target = $region58
            $region55: #{model_forward.1} parent=50 // loop_body
              %v173 = vld [vmem:[%s171] sm:$0xff]
              %174 = vst [vmem:[%s172] sm:$0xff] %v173
              %v175 = vld [vmem:[%s171 + $0x8] sm:$0xff]
              %176 = vst [vmem:[%s172 + $0x8] sm:$0xff] %v175
              %v177 = vld [vmem:[%s171 + $0x10] sm:$0xff]
              %178 = vst [vmem:[%s172 + $0x10] sm:$0xff] %v177
              %v179 = vld [vmem:[%s171 + $0x18] sm:$0xff]
              %180 = vst [vmem:[%s172 + $0x18] sm:$0xff] %v179
              %v181 = vld [vmem:[%s171 + $0x20] sm:$0xff]
              %182 = vst [vmem:[%s172 + $0x20] sm:$0xff] %v181
              %v183 = vld [vmem:[%s171 + $0x28] sm:$0xff]
              %184 = vst [vmem:[%s172 + $0x28] sm:$0xff] %v183
              %v185 = vld [vmem:[%s171 + $0x30] sm:$0xff]
              %186 = vst [vmem:[%s172 + $0x30] sm:$0xff] %v185
              %v187 = vld [vmem:[%s171 + $0x38] sm:$0xff]
              %188 = vst [vmem:[%s172 + $0x38] sm:$0xff] %v187
              %v189 = vld [vmem:[%s171 + $0x40] sm:$0xff]
              %190 = vst [vmem:[%s172 + $0x40] sm:$0xff] %v189
              %v191 = vld [vmem:[%s171 + $0x48] sm:$0xff]
              %192 = vst [vmem:[%s172 + $0x48] sm:$0xff] %v191
              %v193 = vld [vmem:[%s171 + $0x50] sm:$0xff]
              %194 = vst [vmem:[%s172 + $0x50] sm:$0xff] %v193
              %v195 = vld [vmem:[%s171 + $0x58] sm:$0xff]
              %196 = vst [vmem:[%s172 + $0x58] sm:$0xff] %v195
              %v197 = vld [vmem:[%s171 + $0x60] sm:$0xff]
              %198 = vst [vmem:[%s172 + $0x60] sm:$0xff] %v197
              %v199 = vld [vmem:[%s171 + $0x68] sm:$0xff]
              %200 = vst [vmem:[%s172 + $0x68] sm:$0xff] %v199
              %v201 = vld [vmem:[%s171 + $0x70] sm:$0xff]
              %202 = vst [vmem:[%s172 + $0x70] sm:$0xff] %v201
              %v203 = vld [vmem:[%s171 + $0x78] sm:$0xff]
              %204 = vst [vmem:[%s172 + $0x78] sm:$0xff] %v203
              %v205 = vld [vmem:[%s171 + $0x80] sm:$0xff]
              %206 = vst [vmem:[%s172 + $0x80] sm:$0xff] %v205
              %v207 = vld [vmem:[%s171 + $0x88] sm:$0xff]
              %208 = vst [vmem:[%s172 + $0x88] sm:$0xff] %v207
              %v209 = vld [vmem:[%s171 + $0x90] sm:$0xff]
              %210 = vst [vmem:[%s172 + $0x90] sm:$0xff] %v209
              %v211 = vld [vmem:[%s171 + $0x98] sm:$0xff]
              %212 = vst [vmem:[%s172 + $0x98] sm:$0xff] %v211
              %v213 = vld [vmem:[%s171 + $0xa0] sm:$0xff]
              %214 = vst [vmem:[%s172 + $0xa0] sm:$0xff] %v213
              %v215 = vld [vmem:[%s171 + $0xa8] sm:$0xff]
              %216 = vst [vmem:[%s172 + $0xa8] sm:$0xff] %v215
              %v217 = vld [vmem:[%s171 + $0xb0] sm:$0xff]
              %218 = vst [vmem:[%s172 + $0xb0] sm:$0xff] %v217
              %v219 = vld [vmem:[%s171 + $0xb8] sm:$0xff]
              %220 = vst [vmem:[%s172 + $0xb8] sm:$0xff] %v219
              %v221 = vld [vmem:[%s171 + $0xc0] sm:$0xff]
              %222 = vst [vmem:[%s172 + $0xc0] sm:$0xff] %v221
              %v223 = vld [vmem:[%s171 + $0xc8] sm:$0xff]
              %224 = vst [vmem:[%s172 + $0xc8] sm:$0xff] %v223
              %v225 = vld [vmem:[%s171 + $0xd0] sm:$0xff]
              %226 = vst [vmem:[%s172 + $0xd0] sm:$0xff] %v225
              %v227 = vld [vmem:[%s171 + $0xd8] sm:$0xff]
              %228 = vst [vmem:[%s172 + $0xd8] sm:$0xff] %v227
              %v229 = vld [vmem:[%s171 + $0xe0] sm:$0xff]
              %230 = vst [vmem:[%s172 + $0xe0] sm:$0xff] %v229
              %v231 = vld [vmem:[%s171 + $0xe8] sm:$0xff]
              %232 = vst [vmem:[%s172 + $0xe8] sm:$0xff] %v231
              %v233 = vld [vmem:[%s171 + $0xf0] sm:$0xff]
              %234 = vst [vmem:[%s172 + $0xf0] sm:$0xff] %v233
              %v235 = vld [vmem:[%s171 + $0xf8] sm:$0xff]
              %236 = vst [vmem:[%s172 + $0xf8] sm:$0xff] %v235
            $region56: #{model_forward.1} parent=50 // loop_footer
              %s170 = sadd.s32 1, %s166
            $region57: #{model_forward.1} parent=50 // loop_footer_branch
              %165 = sbr.rel target = $region53
            $region58: #{model_forward.1} parent=50 // loop_exit
              _
          $region51: #{model_forward.1} parent=35 // pred_fallthru
            _
          %p237 = pneg %p161
          // Predicated region
          $region59: #{model_forward.1} parent=35 // pred_check
            _
          $region60: #{model_forward.1} parent=35 // pred_check_branch
            %239 = sbr.rel (%p161) target = $region62
          $region61: #{model_forward.1} parent=35 // pred_region
            %s240 = sand.u32 256, 7
          $region62: #{model_forward.1} parent=35 // pred_fallthru
            _
        $region36: #{model_forward.1} parent=31 // pred_fallthru
          _
        // Predicated region
        $region37: #{model_forward.1} parent=31 // pred_check
          %p145 = pneg %p141
        $region38: #{model_forward.1} parent=31 // pred_check_branch
          %147 = sbr.rel (%p145) target = $region40
        $region39: #{model_forward.1} parent=31 // pred_region
          %s148 = sshll.u32 1, 256
          %s149 = ssub.s32 %s148, 1
          loop: start=0, step=1, limit=1
          $region41: #{model_forward.1} parent=39 // loop_pre_header
            _
          $region42: #{model_forward.1} parent=39 // loop_header
            %s151 = sphi 0, %s155
            %p152 = scmp.ge.s32.totalorder %s151, 1
            %s156 = sphi %s0, %s0
            %s157 = sphi [#allocation2], [#allocation2]
          $region43: #{model_forward.1} parent=39 // loop_header_branch
            %154 = sbr.rel (%p152) target = $region47
          $region44: #{model_forward.1} parent=39 // loop_body
            %v158 = vld [vmem:[%s156] sm:%s149]
            %159 = vst [vmem:[%s157] sm:%s149] %v158
          $region45: #{model_forward.1} parent=39 // loop_footer
            %s155 = sadd.s32 1, %s151
          $region46: #{model_forward.1} parent=39 // loop_footer_branch
            %150 = sbr.rel target = $region42
          $region47: #{model_forward.1} parent=39 // loop_exit
            _
        $region40: #{model_forward.1} parent=31 // pred_fallthru
          _
        // Predicated region
        $region63: #{model_forward.1} parent=31 // pred_check
          _
        $region64: #{model_forward.1} parent=31 // pred_check_branch
          %243 = sbr.rel (0) target = $region66
        $region65: #{model_forward.1} parent=31 // pred_region
          %244 = vsyncadd [#allocation5], 4096
        $region66: #{model_forward.1} parent=31 // pred_fallthru
          _
        %s245 = scalar_lea.vmem [#allocation3], 128
        %s246 = scalar_lea.sflag [#allocation5], 1
        %p248 = scmp.lt.u32.totalorder 128, 8
        %p249 = pneg %p248
        // Predicated region
        $region67: #{model_forward.1} parent=31 // pred_check
          _
        $region68: #{model_forward.1} parent=31 // pred_check_branch
          %251 = sbr.rel (%p248) target = $region70
        $region69: #{model_forward.1} parent=31 // pred_region
          %s267 = sand.u32 128, 7
          %p268 = scmp.eq.s32.totalorder %s267, 0
          // Predicated region
          $region82: #{model_forward.1} parent=69 // pred_check
            %p269 = pneg %p268
          $region83: #{model_forward.1} parent=69 // pred_check_branch
            %271 = sbr.rel (%p269) target = $region85
          $region84: #{model_forward.1} parent=69 // pred_region
            loop: start=0, step=1, limit=1
            $region86: #{model_forward.1} parent=84 // loop_pre_header
              _
            $region87: #{model_forward.1} parent=84 // loop_header
              %s273 = sphi 0, %s277
              %p274 = scmp.ge.s32.totalorder %s273, 1
              %s278 = sphi %s1, %s1
              %s279 = sphi %s245, %s245
            $region88: #{model_forward.1} parent=84 // loop_header_branch
              %276 = sbr.rel (%p274) target = $region92
            $region89: #{model_forward.1} parent=84 // loop_body
              %v280 = vld [vmem:[%s278] sm:$0xff]
              %281 = vst [vmem:[%s279] sm:$0xff] %v280
              %v282 = vld [vmem:[%s278 + $0x8] sm:$0xff]
              %283 = vst [vmem:[%s279 + $0x8] sm:$0xff] %v282
              %v284 = vld [vmem:[%s278 + $0x10] sm:$0xff]
              %285 = vst [vmem:[%s279 + $0x10] sm:$0xff] %v284
              %v286 = vld [vmem:[%s278 + $0x18] sm:$0xff]
              %287 = vst [vmem:[%s279 + $0x18] sm:$0xff] %v286
              %v288 = vld [vmem:[%s278 + $0x20] sm:$0xff]
              %289 = vst [vmem:[%s279 + $0x20] sm:$0xff] %v288
              %v290 = vld [vmem:[%s278 + $0x28] sm:$0xff]
              %291 = vst [vmem:[%s279 + $0x28] sm:$0xff] %v290
              %v292 = vld [vmem:[%s278 + $0x30] sm:$0xff]
              %293 = vst [vmem:[%s279 + $0x30] sm:$0xff] %v292
              %v294 = vld [vmem:[%s278 + $0x38] sm:$0xff]
              %295 = vst [vmem:[%s279 + $0x38] sm:$0xff] %v294
              %v296 = vld [vmem:[%s278 + $0x40] sm:$0xff]
              %297 = vst [vmem:[%s279 + $0x40] sm:$0xff] %v296
              %v298 = vld [vmem:[%s278 + $0x48] sm:$0xff]
              %299 = vst [vmem:[%s279 + $0x48] sm:$0xff] %v298
              %v300 = vld [vmem:[%s278 + $0x50] sm:$0xff]
              %301 = vst [vmem:[%s279 + $0x50] sm:$0xff] %v300
              %v302 = vld [vmem:[%s278 + $0x58] sm:$0xff]
              %303 = vst [vmem:[%s279 + $0x58] sm:$0xff] %v302
              %v304 = vld [vmem:[%s278 + $0x60] sm:$0xff]
              %305 = vst [vmem:[%s279 + $0x60] sm:$0xff] %v304
              %v306 = vld [vmem:[%s278 + $0x68] sm:$0xff]
              %307 = vst [vmem:[%s279 + $0x68] sm:$0xff] %v306
              %v308 = vld [vmem:[%s278 + $0x70] sm:$0xff]
              %309 = vst [vmem:[%s279 + $0x70] sm:$0xff] %v308
              %v310 = vld [vmem:[%s278 + $0x78] sm:$0xff]
              %311 = vst [vmem:[%s279 + $0x78] sm:$0xff] %v310
            $region90: #{model_forward.1} parent=84 // loop_footer
              %s277 = sadd.s32 1, %s273
            $region91: #{model_forward.1} parent=84 // loop_footer_branch
              %272 = sbr.rel target = $region87
            $region92: #{model_forward.1} parent=84 // loop_exit
              _
          $region85: #{model_forward.1} parent=69 // pred_fallthru
            _
          %p312 = pneg %p268
          // Predicated region
          $region93: #{model_forward.1} parent=69 // pred_check
            _
          $region94: #{model_forward.1} parent=69 // pred_check_branch
            %314 = sbr.rel (%p268) target = $region96
          $region95: #{model_forward.1} parent=69 // pred_region
            %s315 = sand.u32 128, 7
          $region96: #{model_forward.1} parent=69 // pred_fallthru
            _
        $region70: #{model_forward.1} parent=31 // pred_fallthru
          _
        // Predicated region
        $region71: #{model_forward.1} parent=31 // pred_check
          %p252 = pneg %p248
        $region72: #{model_forward.1} parent=31 // pred_check_branch
          %254 = sbr.rel (%p252) target = $region74
        $region73: #{model_forward.1} parent=31 // pred_region
          %s255 = sshll.u32 1, 128
          %s256 = ssub.s32 %s255, 1
          loop: start=0, step=1, limit=1
          $region75: #{model_forward.1} parent=73 // loop_pre_header
            _
          $region76: #{model_forward.1} parent=73 // loop_header
            %s258 = sphi 0, %s262
            %p259 = scmp.ge.s32.totalorder %s258, 1
            %s263 = sphi %s1, %s1
            %s264 = sphi %s245, %s245
          $region77: #{model_forward.1} parent=73 // loop_header_branch
            %261 = sbr.rel (%p259) target = $region81
          $region78: #{model_forward.1} parent=73 // loop_body
            %v265 = vld [vmem:[%s263] sm:%s256]
            %266 = vst [vmem:[%s264] sm:%s256] %v265
          $region79: #{model_forward.1} parent=73 // loop_footer
            %s262 = sadd.s32 1, %s258
          $region80: #{model_forward.1} parent=73 // loop_footer_branch
            %257 = sbr.rel target = $region76
          $region81: #{model_forward.1} parent=73 // loop_exit
            _
        $region74: #{model_forward.1} parent=31 // pred_fallthru
          _
        // Predicated region
        $region97: #{model_forward.1} parent=31 // pred_check
          _
        $region98: #{model_forward.1} parent=31 // pred_check_branch
          %318 = sbr.rel (0) target = $region100
        $region99: #{model_forward.1} parent=31 // pred_region
          %319 = vsyncadd %s246, 2048
        $region100: #{model_forward.1} parent=31 // pred_fallthru
          _
        %s320 = smul.u32 4, 32
        %s321 = smul.u32 %s320, 1
        %s322 = sshll.u32 %s321, 4
        %323 = dma.done %s246, %s322
        %s324 = smul.u32 %s320, 2
        %s325 = sshll.u32 %s324, 4
        %326 = dma.done [#allocation5], %s325
        %v327 = vld [vmem:[%s245] sm:$0xf]
        %v328 = vld [vmem:[%s245 + $0x4] sm:$0xf]
        %v329 = vld [vmem:[%s245 + $0x8] sm:$0xf]
        %v330 = vld [vmem:[%s245 + $0xc] sm:$0xf]
        %v331 = vld [vmem:[%s245 + $0x10] sm:$0xf]
        %v332 = vld [vmem:[%s245 + $0x14] sm:$0xf]
        %v333 = vld [vmem:[%s245 + $0x18] sm:$0xf]
        %v334 = vld [vmem:[%s245 + $0x1c] sm:$0xf]
        %v335 = vld [vmem:[%s245 + $0x20] sm:$0xf]
        %v336 = vld [vmem:[%s245 + $0x24] sm:$0xf]
        %v337 = vld [vmem:[%s245 + $0x28] sm:$0xf]
        %v338 = vld [vmem:[%s245 + $0x2c] sm:$0xf]
        %v339 = vld [vmem:[%s245 + $0x30] sm:$0xf]
        %v340 = vld [vmem:[%s245 + $0x34] sm:$0xf]
        %v341 = vld [vmem:[%s245 + $0x38] sm:$0xf]
        %v342 = vld [vmem:[%s245 + $0x3c] sm:$0xf]
        %v343 = vld [vmem:[%s245 + $0x40] sm:$0xf]
        %v344 = vld [vmem:[%s245 + $0x44] sm:$0xf]
        %v345 = vld [vmem:[%s245 + $0x48] sm:$0xf]
        %v346 = vld [vmem:[%s245 + $0x4c] sm:$0xf]
        %v347 = vld [vmem:[%s245 + $0x50] sm:$0xf]
        %v348 = vld [vmem:[%s245 + $0x54] sm:$0xf]
        %v349 = vld [vmem:[%s245 + $0x58] sm:$0xf]
        %v350 = vld [vmem:[%s245 + $0x5c] sm:$0xf]
        %v351 = vld [vmem:[%s245 + $0x60] sm:$0xf]
        %v352 = vld [vmem:[%s245 + $0x64] sm:$0xf]
        %v353 = vld [vmem:[%s245 + $0x68] sm:$0xf]
        %v354 = vld [vmem:[%s245 + $0x6c] sm:$0xf]
        %v355 = vld [vmem:[%s245 + $0x70] sm:$0xf]
        %v356 = vld [vmem:[%s245 + $0x74] sm:$0xf]
        %v357 = vld [vmem:[%s245 + $0x78] sm:$0xf]
        %v358 = vld [vmem:[%s245 + $0x7c] sm:$0xf]
        %v359 = vunpack.c.l.bf16 %v327
        %v360 = vunpack.c.l.bf16 %v328
        %v361 = vunpack.c.l.bf16 %v329
        %v362 = vunpack.c.l.bf16 %v330
        %v363 = vunpack.c.l.bf16 %v331
        %v364 = vunpack.c.l.bf16 %v332
        %v365 = vunpack.c.l.bf16 %v333
        %v366 = vunpack.c.l.bf16 %v334
        %v367 = vunpack.c.l.bf16 %v335
        %v368 = vunpack.c.l.bf16 %v336
        %v369 = vunpack.c.l.bf16 %v337
        %v370 = vunpack.c.l.bf16 %v338
        %v371 = vunpack.c.l.bf16 %v339
        %v372 = vunpack.c.l.bf16 %v340
        %v373 = vunpack.c.l.bf16 %v341
        %v374 = vunpack.c.l.bf16 %v342
        %v375 = vunpack.c.l.bf16 %v343
        %v376 = vunpack.c.l.bf16 %v344
        %v377 = vunpack.c.l.bf16 %v345
        %v378 = vunpack.c.l.bf16 %v346
        %v379 = vunpack.c.l.bf16 %v347
        %v380 = vunpack.c.l.bf16 %v348
        %v381 = vunpack.c.l.bf16 %v349
        %v382 = vunpack.c.l.bf16 %v350
        %v383 = vunpack.c.l.bf16 %v351
        %v384 = vunpack.c.l.bf16 %v352
        %v385 = vunpack.c.l.bf16 %v353
        %v386 = vunpack.c.l.bf16 %v354
        %v387 = vunpack.c.l.bf16 %v355
        %v388 = vunpack.c.l.bf16 %v356
        %v389 = vunpack.c.l.bf16 %v357
        %v390 = vunpack.c.l.bf16 %v358
        %v391 = vmul.f32 %v359, 0.1
        %v392 = vmul.f32 %v360, 0.1
        %v393 = vmul.f32 %v361, 0.1
        %v394 = vmul.f32 %v362, 0.1
        %v395 = vmul.f32 %v363, 0.1
        %v396 = vmul.f32 %v364, 0.1
        %v397 = vmul.f32 %v365, 0.1
        %v398 = vmul.f32 %v366, 0.1
        %v399 = vmul.f32 %v367, 0.1
        %v400 = vmul.f32 %v368, 0.1
        %v401 = vmul.f32 %v369, 0.1
        %v402 = vmul.f32 %v370, 0.1
        %v403 = vmul.f32 %v371, 0.1
        %v404 = vmul.f32 %v372, 0.1
        %v405 = vmul.f32 %v373, 0.1
        %v406 = vmul.f32 %v374, 0.1
        %v407 = vmul.f32 %v375, 0.1
        %v408 = vmul.f32 %v376, 0.1
        %v409 = vmul.f32 %v377, 0.1
        %v410 = vmul.f32 %v378, 0.1
        %v411 = vmul.f32 %v379, 0.1
        %v412 = vmul.f32 %v380, 0.1
        %v413 = vmul.f32 %v381, 0.1
        %v414 = vmul.f32 %v382, 0.1
        %v415 = vmul.f32 %v383, 0.1
        %v416 = vmul.f32 %v384, 0.1
        %v417 = vmul.f32 %v385, 0.1
        %v418 = vmul.f32 %v386, 0.1
        %v419 = vmul.f32 %v387, 0.1
        %v420 = vmul.f32 %v388, 0.1
        %v421 = vmul.f32 %v389, 0.1
        %v422 = vmul.f32 %v390, 0.1
        %423 = vst [vmem:[#allocation4] sm:$0xff] %v391
        %424 = vst [vmem:[#allocation4 + $0x8] sm:$0xff] %v392
        %425 = vst [vmem:[#allocation4 + $0x10] sm:$0xff] %v393
        %426 = vst [vmem:[#allocation4 + $0x18] sm:$0xff] %v394
        %427 = vst [vmem:[#allocation4 + $0x20] sm:$0xff] %v395
        %428 = vst [vmem:[#allocation4 + $0x28] sm:$0xff] %v396
        %429 = vst [vmem:[#allocation4 + $0x30] sm:$0xff] %v397
        %430 = vst [vmem:[#allocation4 + $0x38] sm:$0xff] %v398
        %431 = vst [vmem:[#allocation4 + $0x40] sm:$0xff] %v399
        %432 = vst [vmem:[#allocation4 + $0x48] sm:$0xff] %v400
        %433 = vst [vmem:[#allocation4 + $0x50] sm:$0xff] %v401
        %434 = vst [vmem:[#allocation4 + $0x58] sm:$0xff] %v402
        %435 = vst [vmem:[#allocation4 + $0x60] sm:$0xff] %v403
        %436 = vst [vmem:[#allocation4 + $0x68] sm:$0xff] %v404
        %437 = vst [vmem:[#allocation4 + $0x70] sm:$0xff] %v405
        %438 = vst [vmem:[#allocation4 + $0x78] sm:$0xff] %v406
        %439 = vst [vmem:[#allocation4 + $0x80] sm:$0xff] %v407
        %440 = vst [vmem:[#allocation4 + $0x88] sm:$0xff] %v408
        %441 = vst [vmem:[#allocation4 + $0x90] sm:$0xff] %v409
        %442 = vst [vmem:[#allocation4 + $0x98] sm:$0xff] %v410
        %443 = vst [vmem:[#allocation4 + $0xa0] sm:$0xff] %v411
        %444 = vst [vmem:[#allocation4 + $0xa8] sm:$0xff] %v412
        %445 = vst [vmem:[#allocation4 + $0xb0] sm:$0xff] %v413
        %446 = vst [vmem:[#allocation4 + $0xb8] sm:$0xff] %v414
        %447 = vst [vmem:[#allocation4 + $0xc0] sm:$0xff] %v415
        %448 = vst [vmem:[#allocation4 + $0xc8] sm:$0xff] %v416
        %449 = vst [vmem:[#allocation4 + $0xd0] sm:$0xff] %v417
        %450 = vst [vmem:[#allocation4 + $0xd8] sm:$0xff] %v418
        %451 = vst [vmem:[#allocation4 + $0xe0] sm:$0xff] %v419
        %452 = vst [vmem:[#allocation4 + $0xe8] sm:$0xff] %v420
        %453 = vst [vmem:[#allocation4 + $0xf0] sm:$0xff] %v421
        %454 = vst [vmem:[#allocation4 + $0xf8] sm:$0xff] %v422
      $region32: #{model_forward.1} parent=27 // pred_fallthru
        _
      %p455 = scmp.eq.s32.totalorder %s20, 1
      %p456 = pnand %p455, %p132
      %p457 = pneg %p456
      %p458 = pnand %p457, %p135
      %p459 = pneg %p458
      // Predicated region
      $region101: #{model_forward.1} parent=27 // pred_check
        _
      $region102: #{model_forward.1} parent=27 // pred_check_branch
        %461 = sbr.rel (%p458) target = $region104
      $region103: #{model_forward.1} parent=27 // pred_region
        %v462 = vld [vmem:[#allocation3] sm:$0xf]
        %v463 = vld [vmem:[#allocation3 + $0x4] sm:$0xf]
        %v464 = vld [vmem:[#allocation3 + $0x8] sm:$0xf]
        %v465 = vld [vmem:[#allocation3 + $0xc] sm:$0xf]
        %v466 = vld [vmem:[#allocation3 + $0x10] sm:$0xf]
        %v467 = vld [vmem:[#allocation3 + $0x14] sm:$0xf]
        %v468 = vld [vmem:[#allocation3 + $0x18] sm:$0xf]
        %v469 = vld [vmem:[#allocation3 + $0x1c] sm:$0xf]
        %v470 = vld [vmem:[#allocation3 + $0x20] sm:$0xf]
        %v471 = vld [vmem:[#allocation3 + $0x24] sm:$0xf]
        %v472 = vld [vmem:[#allocation3 + $0x28] sm:$0xf]
        %v473 = vld [vmem:[#allocation3 + $0x2c] sm:$0xf]
        %v474 = vld [vmem:[#allocation3 + $0x30] sm:$0xf]
        %v475 = vld [vmem:[#allocation3 + $0x34] sm:$0xf]
        %v476 = vld [vmem:[#allocation3 + $0x38] sm:$0xf]
        %v477 = vld [vmem:[#allocation3 + $0x3c] sm:$0xf]
        %v478 = vld [vmem:[#allocation3 + $0x40] sm:$0xf]
        %v479 = vld [vmem:[#allocation3 + $0x44] sm:$0xf]
        %v480 = vld [vmem:[#allocation3 + $0x48] sm:$0xf]
        %v481 = vld [vmem:[#allocation3 + $0x4c] sm:$0xf]
        %v482 = vld [vmem:[#allocation3 + $0x50] sm:$0xf]
        %v483 = vld [vmem:[#allocation3 + $0x54] sm:$0xf]
        %v484 = vld [vmem:[#allocation3 + $0x58] sm:$0xf]
        %v485 = vld [vmem:[#allocation3 + $0x5c] sm:$0xf]
        %v486 = vld [vmem:[#allocation3 + $0x60] sm:$0xf]
        %v487 = vld [vmem:[#allocation3 + $0x64] sm:$0xf]
        %v488 = vld [vmem:[#allocation3 + $0x68] sm:$0xf]
        %v489 = vld [vmem:[#allocation3 + $0x6c] sm:$0xf]
        %v490 = vld [vmem:[#allocation3 + $0x70] sm:$0xf]
        %v491 = vld [vmem:[#allocation3 + $0x74] sm:$0xf]
        %v492 = vld [vmem:[#allocation3 + $0x78] sm:$0xf]
        %v493 = vld [vmem:[#allocation3 + $0x7c] sm:$0xf]
        %v494 = vmax.bf16 %v462, 0
        %v495 = vmax.bf16 %v463, 0
        %v496 = vmax.bf16 %v464, 0
        %v497 = vmax.bf16 %v465, 0
        %v498 = vmax.bf16 %v466, 0
        %v499 = vmax.bf16 %v467, 0
        %v500 = vmax.bf16 %v468, 0
        %v501 = vmax.bf16 %v469, 0
        %v502 = vmax.bf16 %v470, 0
        %v503 = vmax.bf16 %v471, 0
        %v504 = vmax.bf16 %v472, 0
        %v505 = vmax.bf16 %v473, 0
        %v506 = vmax.bf16 %v474, 0
        %v507 = vmax.bf16 %v475, 0
        %v508 = vmax.bf16 %v476, 0
        %v509 = vmax.bf16 %v477, 0
        %v510 = vmax.bf16 %v478, 0
        %v511 = vmax.bf16 %v479, 0
        %v512 = vmax.bf16 %v480, 0
        %v513 = vmax.bf16 %v481, 0
        %v514 = vmax.bf16 %v482, 0
        %v515 = vmax.bf16 %v483, 0
        %v516 = vmax.bf16 %v484, 0
        %v517 = vmax.bf16 %v485, 0
        %v518 = vmax.bf16 %v486, 0
        %v519 = vmax.bf16 %v487, 0
        %v520 = vmax.bf16 %v488, 0
        %v521 = vmax.bf16 %v489, 0
        %v522 = vmax.bf16 %v490, 0
        %v523 = vmax.bf16 %v491, 0
        %v524 = vmax.bf16 %v492, 0
        %v525 = vmax.bf16 %v493, 0
        %v526 = vld [vmem:[%s2] sm:$0xf]
        %v527 = vld [vmem:[%s2 + $0x4] sm:$0xf]
        %v528 = vld [vmem:[%s2 + $0x8] sm:$0xf]
        %v529 = vld [vmem:[%s2 + $0xc] sm:$0xf]
        %v530 = vld [vmem:[%s2 + $0x10] sm:$0xf]
        %v531 = vld [vmem:[%s2 + $0x14] sm:$0xf]
        %v532 = vld [vmem:[%s2 + $0x18] sm:$0xf]
        %v533 = vld [vmem:[%s2 + $0x1c] sm:$0xf]
        %v534 = vld [vmem:[%s2 + $0x20] sm:$0xf]
        %v535 = vld [vmem:[%s2 + $0x24] sm:$0xf]
        %v536 = vld [vmem:[%s2 + $0x28] sm:$0xf]
        %v537 = vld [vmem:[%s2 + $0x2c] sm:$0xf]
        %v538 = vld [vmem:[%s2 + $0x30] sm:$0xf]
        %v539 = vld [vmem:[%s2 + $0x34] sm:$0xf]
        %v540 = vld [vmem:[%s2 + $0x38] sm:$0xf]
        %v541 = vld [vmem:[%s2 + $0x3c] sm:$0xf]
        %v542 = vld [vmem:[%s3] sm:$0x1]
        %v544 = vlaneseq
        %v545 = vshrl.u32 %v544, 7
        %v546 = vsub.s32 0, %v545
        %v547 = vrot.slane %v542, %v546
        %v581 = vunpack.c.l.b16 %v494
        %v582 = vunpack.c.l.b16 %v495
        %v583 = vunpack.c.l.b16 %v496
        %v584 = vunpack.c.l.b16 %v497
        %v585 = vunpack.c.l.b16 %v498
        %v586 = vunpack.c.l.b16 %v499
        %v587 = vunpack.c.l.b16 %v500
        %v588 = vunpack.c.l.b16 %v501
        %v589 = vunpack.c.l.b16 %v502
        %v590 = vunpack.c.l.b16 %v503
        %v591 = vunpack.c.l.b16 %v504
        %v592 = vunpack.c.l.b16 %v505
        %v593 = vunpack.c.l.b16 %v506
        %v594 = vunpack.c.l.b16 %v507
        %v595 = vunpack.c.l.b16 %v508
        %v596 = vunpack.c.l.b16 %v509
        %v597 = vunpack.c.l.b16 %v510
        %v598 = vunpack.c.l.b16 %v511
        %v599 = vunpack.c.l.b16 %v512
        %v600 = vunpack.c.l.b16 %v513
        %v601 = vunpack.c.l.b16 %v514
        %v602 = vunpack.c.l.b16 %v515
        %v603 = vunpack.c.l.b16 %v516
        %v604 = vunpack.c.l.b16 %v517
        %v605 = vunpack.c.l.b16 %v518
        %v606 = vunpack.c.l.b16 %v519
        %v607 = vunpack.c.l.b16 %v520
        %v608 = vunpack.c.l.b16 %v521
        %v609 = vunpack.c.l.b16 %v522
        %v610 = vunpack.c.l.b16 %v523
        %v611 = vunpack.c.l.b16 %v524
        %v612 = vunpack.c.l.b16 %v525
        %v613 = vpack.c.b16 %v582, %v581
        %v614 = vpack.c.b16 %v584, %v583
        %v615 = vpack.c.b16 %v586, %v585
        %v616 = vpack.c.b16 %v588, %v587
        %v617 = vpack.c.b16 %v590, %v589
        %v618 = vpack.c.b16 %v592, %v591
        %v619 = vpack.c.b16 %v594, %v593
        %v620 = vpack.c.b16 %v596, %v595
        %v621 = vpack.c.b16 %v598, %v597
        %v622 = vpack.c.b16 %v600, %v599
        %v623 = vpack.c.b16 %v602, %v601
        %v624 = vpack.c.b16 %v604, %v603
        %v625 = vpack.c.b16 %v606, %v605
        %v626 = vpack.c.b16 %v608, %v607
        %v627 = vpack.c.b16 %v610, %v609
        %v628 = vpack.c.b16 %v612, %v611
        %v661 = vunpack.c.l.b16 %v526
        %v662 = vunpack.c.l.b16 %v527
        %v663 = vunpack.c.l.b16 %v528
        %v664 = vunpack.c.l.b16 %v529
        %v665 = vunpack.c.l.b16 %v530
        %v666 = vunpack.c.l.b16 %v531
        %v667 = vunpack.c.l.b16 %v532
        %v668 = vunpack.c.l.b16 %v533
        %v669 = vunpack.c.l.b16 %v534
        %v670 = vunpack.c.l.b16 %v535
        %v671 = vunpack.c.l.b16 %v536
        %v672 = vunpack.c.l.b16 %v537
        %v673 = vunpack.c.l.b16 %v538
        %v674 = vunpack.c.l.b16 %v539
        %v675 = vunpack.c.l.b16 %v540
        %v676 = vunpack.c.l.b16 %v541
        %v677 = vpack.c.b16 %v662, %v661
        %v678 = vpack.c.b16 %v664, %v663
        %v679 = vpack.c.b16 %v666, %v665
        %v680 = vpack.c.b16 %v668, %v667
        %v681 = vpack.c.b16 %v670, %v669
        %v682 = vpack.c.b16 %v672, %v671
        %v683 = vpack.c.b16 %v674, %v673
        %v684 = vpack.c.b16 %v676, %v675
        %693 = vmatprep.subr.bf16.mxu0 0
        %694 = vmatpush1.bf16.msra.mxu0 %v684
        %695 = vmatprep.subr.bf16.mxu0 0
        %696 = vmatpush1.bf16.msra.mxu0 %v683
        %697 = vmatprep.subr.bf16.mxu0 0
        %698 = vmatpush1.bf16.msra.mxu0 %v682
        %699 = vmatprep.subr.bf16.mxu0 0
        %700 = vmatpush1.bf16.msra.mxu0 %v681
        %701 = vmatprep.subr.bf16.mxu0 0
        %702 = vmatpush1.bf16.msra.mxu0 %v680
        %703 = vmatprep.subr.bf16.mxu0 0
        %704 = vmatpush1.bf16.msra.mxu0 %v679
        %705 = vmatprep.subr.bf16.mxu0 0
        %706 = vmatpush1.bf16.msra.mxu0 %v678
        %707 = vmatprep.subr.bf16.mxu0 0
        %708 = vmatpush1.bf16.msra.mxu0 %v677
        %709 = vmatprep.subr.bf16.mxu0 0
        %710 = vmatpush2.bf16.msra.mxu0 0
        %711 = vmatprep.subr.bf16.mxu0 0
        %712 = vmatpush2.bf16.msra.mxu0 0
        %713 = vmatprep.subr.bf16.mxu0 0
        %714 = vmatpush2.bf16.msra.mxu0 0
        %715 = vmatprep.subr.bf16.mxu0 0
        %716 = vmatpush2.bf16.msra.mxu0 0
        %717 = vmatprep.subr.bf16.mxu0 0
        %718 = vmatpush2.bf16.msra.mxu0 0
        %719 = vmatprep.subr.bf16.mxu0 0
        %720 = vmatpush2.bf16.msra.mxu0 0
        %721 = vmatprep.subr.bf16.mxu0 0
        %722 = vmatpush2.bf16.msra.mxu0 0
        %723 = vmatprep.subr.bf16.mxu0 0
        %724 = vmatpush2.bf16.msra.mxu0 0
        %725 = vmatprep.mubr.bf16.mxu0 0
        %726 = vmatmul.mubr.bf16.gmra.mxu0 %v613
        %v727 = vpop.f32.mrf.mxu0
        %v728 = vadd.f32 %v547, %v727
        %v729 = vpop.f32.mrf.mxu0
        %v730 = vpop.f32.mrf.mxu0
        %v731 = vadd.f32 %v547, %v730
        %v732 = vpop.f32.mrf.mxu0
        %733 = vmatprep.mubr.bf16.mxu0 0
        %734 = vmatmul.mubr.bf16.gmra.mxu0 %v614
        %v735 = vpop.f32.mrf.mxu0
        %v736 = vadd.f32 %v547, %v735
        %v737 = vpop.f32.mrf.mxu0
        %v738 = vpop.f32.mrf.mxu0
        %v739 = vadd.f32 %v547, %v738
        %v740 = vpop.f32.mrf.mxu0
        %741 = vmatprep.mubr.bf16.mxu0 0
        %742 = vmatmul.mubr.bf16.gmra.mxu0 %v615
        %v743 = vpop.f32.mrf.mxu0
        %v744 = vadd.f32 %v547, %v743
        %v745 = vpop.f32.mrf.mxu0
        %v746 = vpop.f32.mrf.mxu0
        %v747 = vadd.f32 %v547, %v746
        %v748 = vpop.f32.mrf.mxu0
        %749 = vmatprep.mubr.bf16.mxu0 0
        %750 = vmatmul.mubr.bf16.gmra.mxu0 %v616
        %v751 = vpop.f32.mrf.mxu0
        %v752 = vadd.f32 %v547, %v751
        %v753 = vpop.f32.mrf.mxu0
        %v754 = vpop.f32.mrf.mxu0
        %v755 = vadd.f32 %v547, %v754
        %v756 = vpop.f32.mrf.mxu0
        %757 = vmatprep.mubr.bf16.mxu0 0
        %758 = vmatmul.mubr.bf16.gmra.mxu0 %v617
        %v759 = vpop.f32.mrf.mxu0
        %v760 = vadd.f32 %v547, %v759
        %v761 = vpop.f32.mrf.mxu0
        %v762 = vpop.f32.mrf.mxu0
        %v763 = vadd.f32 %v547, %v762
        %v764 = vpop.f32.mrf.mxu0
        %765 = vmatprep.mubr.bf16.mxu0 0
        %766 = vmatmul.mubr.bf16.gmra.mxu0 %v618
        %v767 = vpop.f32.mrf.mxu0
        %v768 = vadd.f32 %v547, %v767
        %v769 = vpop.f32.mrf.mxu0
        %v770 = vpop.f32.mrf.mxu0
        %v771 = vadd.f32 %v547, %v770
        %v772 = vpop.f32.mrf.mxu0
        %773 = vmatprep.mubr.bf16.mxu0 0
        %774 = vmatmul.mubr.bf16.gmra.mxu0 %v619
        %v775 = vpop.f32.mrf.mxu0
        %v776 = vadd.f32 %v547, %v775
        %v777 = vpop.f32.mrf.mxu0
        %v778 = vpop.f32.mrf.mxu0
        %v779 = vadd.f32 %v547, %v778
        %v780 = vpop.f32.mrf.mxu0
        %781 = vmatprep.mubr.bf16.mxu0 0
        %782 = vmatmul.mubr.bf16.gmra.mxu0 %v620
        %v783 = vpop.f32.mrf.mxu0
        %v784 = vadd.f32 %v547, %v783
        %v785 = vpop.f32.mrf.mxu0
        %v786 = vpop.f32.mrf.mxu0
        %v787 = vadd.f32 %v547, %v786
        %v788 = vpop.f32.mrf.mxu0
        %789 = vmatprep.mubr.bf16.mxu0 0
        %790 = vmatmul.mubr.bf16.gmra.mxu0 %v621
        %v791 = vpop.f32.mrf.mxu0
        %v792 = vadd.f32 %v547, %v791
        %v793 = vpop.f32.mrf.mxu0
        %v794 = vpop.f32.mrf.mxu0
        %v795 = vadd.f32 %v547, %v794
        %v796 = vpop.f32.mrf.mxu0
        %797 = vmatprep.mubr.bf16.mxu0 0
        %798 = vmatmul.mubr.bf16.gmra.mxu0 %v622
        %v799 = vpop.f32.mrf.mxu0
        %v800 = vadd.f32 %v547, %v799
        %v801 = vpop.f32.mrf.mxu0
        %v802 = vpop.f32.mrf.mxu0
        %v803 = vadd.f32 %v547, %v802
        %v804 = vpop.f32.mrf.mxu0
        %805 = vmatprep.mubr.bf16.mxu0 0
        %806 = vmatmul.mubr.bf16.gmra.mxu0 %v623
        %v807 = vpop.f32.mrf.mxu0
        %v808 = vadd.f32 %v547, %v807
        %v809 = vpop.f32.mrf.mxu0
        %v810 = vpop.f32.mrf.mxu0
        %v811 = vadd.f32 %v547, %v810
        %v812 = vpop.f32.mrf.mxu0
        %813 = vmatprep.mubr.bf16.mxu0 0
        %814 = vmatmul.mubr.bf16.gmra.mxu0 %v624
        %v815 = vpop.f32.mrf.mxu0
        %v816 = vadd.f32 %v547, %v815
        %v817 = vpop.f32.mrf.mxu0
        %v818 = vpop.f32.mrf.mxu0
        %v819 = vadd.f32 %v547, %v818
        %v820 = vpop.f32.mrf.mxu0
        %821 = vmatprep.mubr.bf16.mxu0 0
        %822 = vmatmul.mubr.bf16.gmra.mxu0 %v625
        %v823 = vpop.f32.mrf.mxu0
        %v824 = vadd.f32 %v547, %v823
        %v825 = vpop.f32.mrf.mxu0
        %v826 = vpop.f32.mrf.mxu0
        %v827 = vadd.f32 %v547, %v826
        %v828 = vpop.f32.mrf.mxu0
        %829 = vmatprep.mubr.bf16.mxu0 0
        %830 = vmatmul.mubr.bf16.gmra.mxu0 %v626
        %v831 = vpop.f32.mrf.mxu0
        %v832 = vadd.f32 %v547, %v831
        %v833 = vpop.f32.mrf.mxu0
        %v834 = vpop.f32.mrf.mxu0
        %v835 = vadd.f32 %v547, %v834
        %v836 = vpop.f32.mrf.mxu0
        %837 = vmatprep.mubr.bf16.mxu0 0
        %838 = vmatmul.mubr.bf16.gmra.mxu0 %v627
        %v839 = vpop.f32.mrf.mxu0
        %v840 = vadd.f32 %v547, %v839
        %v841 = vpop.f32.mrf.mxu0
        %v842 = vpop.f32.mrf.mxu0
        %v843 = vadd.f32 %v547, %v842
        %v844 = vpop.f32.mrf.mxu0
        %845 = vmatprep.mubr.bf16.mxu0 0
        %846 = vmatmul.mubr.bf16.gmra.mxu0 %v628
        %v847 = vpop.f32.mrf.mxu0
        %v848 = vadd.f32 %v547, %v847
        %v849 = vpop.f32.mrf.mxu0
        %v850 = vpop.f32.mrf.mxu0
        %v851 = vadd.f32 %v547, %v850
        %v852 = vpop.f32.mrf.mxu0
        %853 = vdwg.mxu0
        %v854 = vpack.c.bf16 %v731, %v728
        %v855 = vpack.c.bf16 %v739, %v736
        %v856 = vpack.c.bf16 %v747, %v744
        %v857 = vpack.c.bf16 %v755, %v752
        %v858 = vpack.c.bf16 %v763, %v760
        %v859 = vpack.c.bf16 %v771, %v768
        %v860 = vpack.c.bf16 %v779, %v776
        %v861 = vpack.c.bf16 %v787, %v784
        %v862 = vpack.c.bf16 %v795, %v792
        %v863 = vpack.c.bf16 %v803, %v800
        %v864 = vpack.c.bf16 %v811, %v808
        %v865 = vpack.c.bf16 %v819, %v816
        %v866 = vpack.c.bf16 %v827, %v824
        %v867 = vpack.c.bf16 %v835, %v832
        %v868 = vpack.c.bf16 %v843, %v840
        %v869 = vpack.c.bf16 %v851, %v848
        %v886 = vunpack.c.l.b16 %v854
        %v887 = vunpack.c.h.b16 %v854
        %v888 = vunpack.c.l.b16 %v855
        %v889 = vunpack.c.h.b16 %v855
        %v890 = vunpack.c.l.b16 %v856
        %v891 = vunpack.c.h.b16 %v856
        %v892 = vunpack.c.l.b16 %v857
        %v893 = vunpack.c.h.b16 %v857
        %v894 = vunpack.c.l.b16 %v858
        %v895 = vunpack.c.h.b16 %v858
        %v896 = vunpack.c.l.b16 %v859
        %v897 = vunpack.c.h.b16 %v859
        %v898 = vunpack.c.l.b16 %v860
        %v899 = vunpack.c.h.b16 %v860
        %v900 = vunpack.c.l.b16 %v861
        %v901 = vunpack.c.h.b16 %v861
        %v902 = vunpack.c.l.b16 %v862
        %v903 = vunpack.c.h.b16 %v862
        %v904 = vunpack.c.l.b16 %v863
        %v905 = vunpack.c.h.b16 %v863
        %v906 = vunpack.c.l.b16 %v864
        %v907 = vunpack.c.h.b16 %v864
        %v908 = vunpack.c.l.b16 %v865
        %v909 = vunpack.c.h.b16 %v865
        %v910 = vunpack.c.l.b16 %v866
        %v911 = vunpack.c.h.b16 %v866
        %v912 = vunpack.c.l.b16 %v867
        %v913 = vunpack.c.h.b16 %v867
        %v914 = vunpack.c.l.b16 %v868
        %v915 = vunpack.c.h.b16 %v868
        %v916 = vunpack.c.l.b16 %v869
        %v917 = vunpack.c.h.b16 %v869
        %v918 = vpack.c.b16 %v886, %v886
        %v919 = vpack.c.b16 %v887, %v887
        %v920 = vpack.c.b16 %v888, %v888
        %v921 = vpack.c.b16 %v889, %v889
        %v922 = vpack.c.b16 %v890, %v890
        %v923 = vpack.c.b16 %v891, %v891
        %v924 = vpack.c.b16 %v892, %v892
        %v925 = vpack.c.b16 %v893, %v893
        %v926 = vpack.c.b16 %v894, %v894
        %v927 = vpack.c.b16 %v895, %v895
        %v928 = vpack.c.b16 %v896, %v896
        %v929 = vpack.c.b16 %v897, %v897
        %v930 = vpack.c.b16 %v898, %v898
        %v931 = vpack.c.b16 %v899, %v899
        %v932 = vpack.c.b16 %v900, %v900
        %v933 = vpack.c.b16 %v901, %v901
        %v934 = vpack.c.b16 %v902, %v902
        %v935 = vpack.c.b16 %v903, %v903
        %v936 = vpack.c.b16 %v904, %v904
        %v937 = vpack.c.b16 %v905, %v905
        %v938 = vpack.c.b16 %v906, %v906
        %v939 = vpack.c.b16 %v907, %v907
        %v940 = vpack.c.b16 %v908, %v908
        %v941 = vpack.c.b16 %v909, %v909
        %v942 = vpack.c.b16 %v910, %v910
        %v943 = vpack.c.b16 %v911, %v911
        %v944 = vpack.c.b16 %v912, %v912
        %v945 = vpack.c.b16 %v913, %v913
        %v946 = vpack.c.b16 %v914, %v914
        %v947 = vpack.c.b16 %v915, %v915
        %v948 = vpack.c.b16 %v916, %v916
        %v949 = vpack.c.b16 %v917, %v917
        %s982 = scalar_lea.vmem [#allocation3], 128
        %983 = vst [vmem:[%s982] sm:$0xf] %v918
        %984 = vst [vmem:[%s982 + $0x4] sm:$0xf] %v919
        %985 = vst [vmem:[%s982 + $0x8] sm:$0xf] %v920
        %986 = vst [vmem:[%s982 + $0xc] sm:$0xf] %v921
        %987 = vst [vmem:[%s982 + $0x10] sm:$0xf] %v922
        %988 = vst [vmem:[%s982 + $0x14] sm:$0xf] %v923
        %989 = vst [vmem:[%s982 + $0x18] sm:$0xf] %v924
        %990 = vst [vmem:[%s982 + $0x1c] sm:$0xf] %v925
        %991 = vst [vmem:[%s982 + $0x20] sm:$0xf] %v926
        %992 = vst [vmem:[%s982 + $0x24] sm:$0xf] %v927
        %993 = vst [vmem:[%s982 + $0x28] sm:$0xf] %v928
        %994 = vst [vmem:[%s982 + $0x2c] sm:$0xf] %v929
        %995 = vst [vmem:[%s982 + $0x30] sm:$0xf] %v930
        %996 = vst [vmem:[%s982 + $0x34] sm:$0xf] %v931
        %997 = vst [vmem:[%s982 + $0x38] sm:$0xf] %v932
        %998 = vst [vmem:[%s982 + $0x3c] sm:$0xf] %v933
        %999 = vst [vmem:[%s982 + $0x40] sm:$0xf] %v934
        %1000 = vst [vmem:[%s982 + $0x44] sm:$0xf] %v935
        %1001 = vst [vmem:[%s982 + $0x48] sm:$0xf] %v936
        %1002 = vst [vmem:[%s982 + $0x4c] sm:$0xf] %v937
        %1003 = vst [vmem:[%s982 + $0x50] sm:$0xf] %v938
        %1004 = vst [vmem:[%s982 + $0x54] sm:$0xf] %v939
        %1005 = vst [vmem:[%s982 + $0x58] sm:$0xf] %v940
        %1006 = vst [vmem:[%s982 + $0x5c] sm:$0xf] %v941
        %1007 = vst [vmem:[%s982 + $0x60] sm:$0xf] %v942
        %1008 = vst [vmem:[%s982 + $0x64] sm:$0xf] %v943
        %1009 = vst [vmem:[%s982 + $0x68] sm:$0xf] %v944
        %1010 = vst [vmem:[%s982 + $0x6c] sm:$0xf] %v945
        %1011 = vst [vmem:[%s982 + $0x70] sm:$0xf] %v946
        %1012 = vst [vmem:[%s982 + $0x74] sm:$0xf] %v947
        %1013 = vst [vmem:[%s982 + $0x78] sm:$0xf] %v948
        %1014 = vst [vmem:[%s982 + $0x7c] sm:$0xf] %v949
        %v1015 = vmul.f32 %v728, 0.1
        %v1016 = vmul.f32 %v731, 0.1
        %v1017 = vmul.f32 %v736, 0.1
        %v1018 = vmul.f32 %v739, 0.1
        %v1019 = vmul.f32 %v744, 0.1
        %v1020 = vmul.f32 %v747, 0.1
        %v1021 = vmul.f32 %v752, 0.1
        %v1022 = vmul.f32 %v755, 0.1
        %v1023 = vmul.f32 %v760, 0.1
        %v1024 = vmul.f32 %v763, 0.1
        %v1025 = vmul.f32 %v768, 0.1
        %v1026 = vmul.f32 %v771, 0.1
        %v1027 = vmul.f32 %v776, 0.1
        %v1028 = vmul.f32 %v779, 0.1
        %v1029 = vmul.f32 %v784, 0.1
        %v1030 = vmul.f32 %v787, 0.1
        %v1031 = vmul.f32 %v792, 0.1
        %v1032 = vmul.f32 %v795, 0.1
        %v1033 = vmul.f32 %v800, 0.1
        %v1034 = vmul.f32 %v803, 0.1
        %v1035 = vmul.f32 %v808, 0.1
        %v1036 = vmul.f32 %v811, 0.1
        %v1037 = vmul.f32 %v816, 0.1
        %v1038 = vmul.f32 %v819, 0.1
        %v1039 = vmul.f32 %v824, 0.1
        %v1040 = vmul.f32 %v827, 0.1
        %v1041 = vmul.f32 %v832, 0.1
        %v1042 = vmul.f32 %v835, 0.1
        %v1043 = vmul.f32 %v840, 0.1
        %v1044 = vmul.f32 %v843, 0.1
        %v1045 = vmul.f32 %v848, 0.1
        %v1046 = vmul.f32 %v851, 0.1
        %1047 = vst [vmem:[#allocation4] sm:$0xff] %v1015
        %1048 = vst [vmem:[#allocation4 + $0x8] sm:$0xff] %v1016
        %1049 = vst [vmem:[#allocation4 + $0x10] sm:$0xff] %v1017
        %1050 = vst [vmem:[#allocation4 + $0x18] sm:$0xff] %v1018
        %1051 = vst [vmem:[#allocation4 + $0x20] sm:$0xff] %v1019
        %1052 = vst [vmem:[#allocation4 + $0x28] sm:$0xff] %v1020
        %1053 = vst [vmem:[#allocation4 + $0x30] sm:$0xff] %v1021
        %1054 = vst [vmem:[#allocation4 + $0x38] sm:$0xff] %v1022
        %1055 = vst [vmem:[#allocation4 + $0x40] sm:$0xff] %v1023
        %1056 = vst [vmem:[#allocation4 + $0x48] sm:$0xff] %v1024
        %1057 = vst [vmem:[#allocation4 + $0x50] sm:$0xff] %v1025
        %1058 = vst [vmem:[#allocation4 + $0x58] sm:$0xff] %v1026
        %1059 = vst [vmem:[#allocation4 + $0x60] sm:$0xff] %v1027
        %1060 = vst [vmem:[#allocation4 + $0x68] sm:$0xff] %v1028
        %1061 = vst [vmem:[#allocation4 + $0x70] sm:$0xff] %v1029
        %1062 = vst [vmem:[#allocation4 + $0x78] sm:$0xff] %v1030
        %1063 = vst [vmem:[#allocation4 + $0x80] sm:$0xff] %v1031
        %1064 = vst [vmem:[#allocation4 + $0x88] sm:$0xff] %v1032
        %1065 = vst [vmem:[#allocation4 + $0x90] sm:$0xff] %v1033
        %1066 = vst [vmem:[#allocation4 + $0x98] sm:$0xff] %v1034
        %1067 = vst [vmem:[#allocation4 + $0xa0] sm:$0xff] %v1035
        %1068 = vst [vmem:[#allocation4 + $0xa8] sm:$0xff] %v1036
        %1069 = vst [vmem:[#allocation4 + $0xb0] sm:$0xff] %v1037
        %1070 = vst [vmem:[#allocation4 + $0xb8] sm:$0xff] %v1038
        %1071 = vst [vmem:[#allocation4 + $0xc0] sm:$0xff] %v1039
        %1072 = vst [vmem:[#allocation4 + $0xc8] sm:$0xff] %v1040
        %1073 = vst [vmem:[#allocation4 + $0xd0] sm:$0xff] %v1041
        %1074 = vst [vmem:[#allocation4 + $0xd8] sm:$0xff] %v1042
        %1075 = vst [vmem:[#allocation4 + $0xe0] sm:$0xff] %v1043
        %1076 = vst [vmem:[#allocation4 + $0xe8] sm:$0xff] %v1044
        %1077 = vst [vmem:[#allocation4 + $0xf0] sm:$0xff] %v1045
        %1078 = vst [vmem:[#allocation4 + $0xf8] sm:$0xff] %v1046
      $region104: #{model_forward.1} parent=27 // pred_fallthru
        _
      %p1079 = scmp.lt.s32.totalorder %s21, 0
      %s1080 = ssub.s32 0, %s21
      %s1081 = scalar_select %p1079, %s1080, %s21
      %s1082 = sand.u32 %s1081, 1
      %s1083 = ssub.s32 0, %s1082
      %s1084 = scalar_select %p1079, %s1083, %s1082
      %p1085 = scmp.ne.s32.totalorder %s1084, 0
      %p1086 = scmp.lt.s32.totalorder %s1084, 0
      %p1087 = pnand %p1086, %p1085
      %p1088 = pneg %p1087
      %s1089 = sadd.s32 %s1084, 2
      %s1090 = scalar_select %p1088, %s1089, %s1084
      %s1091 = ssub.s32 1, %s1090
      %s1092 = smul.u32 %s22, 256
      %s1093 = sshra.s32 %s1092, 3
      %s1094 = sand.u32 %s1092, 7
      %s1095 = smul.u32 %s1093, 2
      %s1096 = smul.addr %s1095, 4
      %s1097 = scalar_lea.vmem [#allocation2], %s1096
      %v1098 = vld [vmem:[%s1097] sm:$0xff]
      %v1099 = vld [vmem:[%s1097 + $0x8] sm:$0xff]
      %v1100 = vld [vmem:[%s1097 + $0x10] sm:$0xff]
      %v1101 = vld [vmem:[%s1097 + $0x18] sm:$0xff]
      %v1102 = vld [vmem:[%s1097 + $0x20] sm:$0xff]
      %v1103 = vld [vmem:[%s1097 + $0x28] sm:$0xff]
      %v1104 = vld [vmem:[%s1097 + $0x30] sm:$0xff]
      %v1105 = vld [vmem:[%s1097 + $0x38] sm:$0xff]
      %v1106 = vld [vmem:[%s1097 + $0x40] sm:$0xff]
      %v1107 = vld [vmem:[%s1097 + $0x48] sm:$0xff]
      %v1108 = vld [vmem:[%s1097 + $0x50] sm:$0xff]
      %v1109 = vld [vmem:[%s1097 + $0x58] sm:$0xff]
      %v1110 = vld [vmem:[%s1097 + $0x60] sm:$0xff]
      %v1111 = vld [vmem:[%s1097 + $0x68] sm:$0xff]
      %v1112 = vld [vmem:[%s1097 + $0x70] sm:$0xff]
      %v1113 = vld [vmem:[%s1097 + $0x78] sm:$0xff]
      %v1114 = vld [vmem:[%s1097 + $0x80] sm:$0xff]
      %v1115 = vld [vmem:[%s1097 + $0x88] sm:$0xff]
      %v1116 = vld [vmem:[%s1097 + $0x90] sm:$0xff]
      %v1117 = vld [vmem:[%s1097 + $0x98] sm:$0xff]
      %v1118 = vld [vmem:[%s1097 + $0xa0] sm:$0xff]
      %v1119 = vld [vmem:[%s1097 + $0xa8] sm:$0xff]
      %v1120 = vld [vmem:[%s1097 + $0xb0] sm:$0xff]
      %v1121 = vld [vmem:[%s1097 + $0xb8] sm:$0xff]
      %v1122 = vld [vmem:[%s1097 + $0xc0] sm:$0xff]
      %v1123 = vld [vmem:[%s1097 + $0xc8] sm:$0xff]
      %v1124 = vld [vmem:[%s1097 + $0xd0] sm:$0xff]
      %v1125 = vld [vmem:[%s1097 + $0xd8] sm:$0xff]
      %v1126 = vld [vmem:[%s1097 + $0xe0] sm:$0xff]
      %v1127 = vld [vmem:[%s1097 + $0xe8] sm:$0xff]
      %v1128 = vld [vmem:[%s1097 + $0xf0] sm:$0xff]
      %v1129 = vld [vmem:[%s1097 + $0xf8] sm:$0xff]
      %s1130 = smul.u32 %s1091, 32
      %s1131 = smul.addr %s1130, 4
      %s1132 = scalar_lea.vmem [#allocation3], %s1131
      %v1133 = vld [vmem:[%s1132] sm:$0xf]
      %v1134 = vld [vmem:[%s1132 + $0x4] sm:$0xf]
      %v1135 = vld [vmem:[%s1132 + $0x8] sm:$0xf]
      %v1136 = vld [vmem:[%s1132 + $0xc] sm:$0xf]
      %v1137 = vld [vmem:[%s1132 + $0x10] sm:$0xf]
      %v1138 = vld [vmem:[%s1132 + $0x14] sm:$0xf]
      %v1139 = vld [vmem:[%s1132 + $0x18] sm:$0xf]
      %v1140 = vld [vmem:[%s1132 + $0x1c] sm:$0xf]
      %v1141 = vld [vmem:[%s1132 + $0x20] sm:$0xf]
      %v1142 = vld [vmem:[%s1132 + $0x24] sm:$0xf]
      %v1143 = vld [vmem:[%s1132 + $0x28] sm:$0xf]
      %v1144 = vld [vmem:[%s1132 + $0x2c] sm:$0xf]
      %v1145 = vld [vmem:[%s1132 + $0x30] sm:$0xf]
      %v1146 = vld [vmem:[%s1132 + $0x34] sm:$0xf]
      %v1147 = vld [vmem:[%s1132 + $0x38] sm:$0xf]
      %v1148 = vld [vmem:[%s1132 + $0x3c] sm:$0xf]
      %v1149 = vld [vmem:[%s1132 + $0x40] sm:$0xf]
      %v1150 = vld [vmem:[%s1132 + $0x44] sm:$0xf]
      %v1151 = vld [vmem:[%s1132 + $0x48] sm:$0xf]
      %v1152 = vld [vmem:[%s1132 + $0x4c] sm:$0xf]
      %v1153 = vld [vmem:[%s1132 + $0x50] sm:$0xf]
      %v1154 = vld [vmem:[%s1132 + $0x54] sm:$0xf]
      %v1155 = vld [vmem:[%s1132 + $0x58] sm:$0xf]
      %v1156 = vld [vmem:[%s1132 + $0x5c] sm:$0xf]
      %v1157 = vld [vmem:[%s1132 + $0x60] sm:$0xf]
      %v1158 = vld [vmem:[%s1132 + $0x64] sm:$0xf]
      %v1159 = vld [vmem:[%s1132 + $0x68] sm:$0xf]
      %v1160 = vld [vmem:[%s1132 + $0x6c] sm:$0xf]
      %v1161 = vld [vmem:[%s1132 + $0x70] sm:$0xf]
      %v1162 = vld [vmem:[%s1132 + $0x74] sm:$0xf]
      %v1163 = vld [vmem:[%s1132 + $0x78] sm:$0xf]
      %v1164 = vld [vmem:[%s1132 + $0x7c] sm:$0xf]
      %s1165 = scalar_lea.vmem [#allocation4], %s1092
      %v1166 = vld [vmem:[%s1165] sm:$0xff]
      %v1167 = vld [vmem:[%s1165 + $0x8] sm:$0xff]
      %v1168 = vld [vmem:[%s1165 + $0x10] sm:$0xff]
      %v1169 = vld [vmem:[%s1165 + $0x18] sm:$0xff]
      %v1170 = vld [vmem:[%s1165 + $0x20] sm:$0xff]
      %v1171 = vld [vmem:[%s1165 + $0x28] sm:$0xff]
      %v1172 = vld [vmem:[%s1165 + $0x30] sm:$0xff]
      %v1173 = vld [vmem:[%s1165 + $0x38] sm:$0xff]
      %v1174 = vld [vmem:[%s1165 + $0x40] sm:$0xff]
      %v1175 = vld [vmem:[%s1165 + $0x48] sm:$0xff]
      %v1176 = vld [vmem:[%s1165 + $0x50] sm:$0xff]
      %v1177 = vld [vmem:[%s1165 + $0x58] sm:$0xff]
      %v1178 = vld [vmem:[%s1165 + $0x60] sm:$0xff]
      %v1179 = vld [vmem:[%s1165 + $0x68] sm:$0xff]
      %v1180 = vld [vmem:[%s1165 + $0x70] sm:$0xff]
      %v1181 = vld [vmem:[%s1165 + $0x78] sm:$0xff]
      %v1182 = vld [vmem:[%s1165 + $0x80] sm:$0xff]
      %v1183 = vld [vmem:[%s1165 + $0x88] sm:$0xff]
      %v1184 = vld [vmem:[%s1165 + $0x90] sm:$0xff]
      %v1185 = vld [vmem:[%s1165 + $0x98] sm:$0xff]
      %v1186 = vld [vmem:[%s1165 + $0xa0] sm:$0xff]
      %v1187 = vld [vmem:[%s1165 + $0xa8] sm:$0xff]
      %v1188 = vld [vmem:[%s1165 + $0xb0] sm:$0xff]
      %v1189 = vld [vmem:[%s1165 + $0xb8] sm:$0xff]
      %v1190 = vld [vmem:[%s1165 + $0xc0] sm:$0xff]
      %v1191 = vld [vmem:[%s1165 + $0xc8] sm:$0xff]
      %v1192 = vld [vmem:[%s1165 + $0xd0] sm:$0xff]
      %v1193 = vld [vmem:[%s1165 + $0xd8] sm:$0xff]
      %v1194 = vld [vmem:[%s1165 + $0xe0] sm:$0xff]
      %v1195 = vld [vmem:[%s1165 + $0xe8] sm:$0xff]
      %v1196 = vld [vmem:[%s1165 + $0xf0] sm:$0xff]
      %v1197 = vld [vmem:[%s1165 + $0xf8] sm:$0xff]
      %v1230 = vunpack.c.l.b16 %v1098
      %v1231 = vunpack.c.h.b16 %v1098
      %v1232 = vunpack.c.l.b16 %v1099
      %v1233 = vunpack.c.h.b16 %v1099
      %v1234 = vunpack.c.l.b16 %v1100
      %v1235 = vunpack.c.h.b16 %v1100
      %v1236 = vunpack.c.l.b16 %v1101
      %v1237 = vunpack.c.h.b16 %v1101
      %v1238 = vunpack.c.l.b16 %v1102
      %v1239 = vunpack.c.h.b16 %v1102
      %v1240 = vunpack.c.l.b16 %v1103
      %v1241 = vunpack.c.h.b16 %v1103
      %v1242 = vunpack.c.l.b16 %v1104
      %v1243 = vunpack.c.h.b16 %v1104
      %v1244 = vunpack.c.l.b16 %v1105
      %v1245 = vunpack.c.h.b16 %v1105
      %v1246 = vunpack.c.l.b16 %v1106
      %v1247 = vunpack.c.h.b16 %v1106
      %v1248 = vunpack.c.l.b16 %v1107
      %v1249 = vunpack.c.h.b16 %v1107
      %v1250 = vunpack.c.l.b16 %v1108
      %v1251 = vunpack.c.h.b16 %v1108
      %v1252 = vunpack.c.l.b16 %v1109
      %v1253 = vunpack.c.h.b16 %v1109
      %v1254 = vunpack.c.l.b16 %v1110
      %v1255 = vunpack.c.h.b16 %v1110
      %v1256 = vunpack.c.l.b16 %v1111
      %v1257 = vunpack.c.h.b16 %v1111
      %v1258 = vunpack.c.l.b16 %v1112
      %v1259 = vunpack.c.h.b16 %v1112
      %v1260 = vunpack.c.l.b16 %v1113
      %v1261 = vunpack.c.h.b16 %v1113
      %v1262 = vunpack.c.l.b16 %v1114
      %v1263 = vunpack.c.h.b16 %v1114
      %v1264 = vunpack.c.l.b16 %v1115
      %v1265 = vunpack.c.h.b16 %v1115
      %v1266 = vunpack.c.l.b16 %v1116
      %v1267 = vunpack.c.h.b16 %v1116
      %v1268 = vunpack.c.l.b16 %v1117
      %v1269 = vunpack.c.h.b16 %v1117
      %v1270 = vunpack.c.l.b16 %v1118
      %v1271 = vunpack.c.h.b16 %v1118
      %v1272 = vunpack.c.l.b16 %v1119
      %v1273 = vunpack.c.h.b16 %v1119
      %v1274 = vunpack.c.l.b16 %v1120
      %v1275 = vunpack.c.h.b16 %v1120
      %v1276 = vunpack.c.l.b16 %v1121
      %v1277 = vunpack.c.h.b16 %v1121
      %v1278 = vunpack.c.l.b16 %v1122
      %v1279 = vunpack.c.h.b16 %v1122
      %v1280 = vunpack.c.l.b16 %v1123
      %v1281 = vunpack.c.h.b16 %v1123
      %v1282 = vunpack.c.l.b16 %v1124
      %v1283 = vunpack.c.h.b16 %v1124
      %v1284 = vunpack.c.l.b16 %v1125
      %v1285 = vunpack.c.h.b16 %v1125
      %v1286 = vunpack.c.l.b16 %v1126
      %v1287 = vunpack.c.h.b16 %v1126
      %v1288 = vunpack.c.l.b16 %v1127
      %v1289 = vunpack.c.h.b16 %v1127
      %v1290 = vunpack.c.l.b16 %v1128
      %v1291 = vunpack.c.h.b16 %v1128
      %v1292 = vunpack.c.l.b16 %v1129
      %v1293 = vunpack.c.h.b16 %v1129
      %v1294 = vpack.c.b16 %v1232, %v1230
      %v1295 = vpack.c.b16 %v1233, %v1231
      %v1296 = vpack.c.b16 %v1236, %v1234
      %v1297 = vpack.c.b16 %v1237, %v1235
      %v1298 = vpack.c.b16 %v1240, %v1238
      %v1299 = vpack.c.b16 %v1241, %v1239
      %v1300 = vpack.c.b16 %v1244, %v1242
      %v1301 = vpack.c.b16 %v1245, %v1243
      %v1302 = vpack.c.b16 %v1248, %v1246
      %v1303 = vpack.c.b16 %v1249, %v1247
      %v1304 = vpack.c.b16 %v1252, %v1250
      %v1305 = vpack.c.b16 %v1253, %v1251
      %v1306 = vpack.c.b16 %v1256, %v1254
      %v1307 = vpack.c.b16 %v1257, %v1255
      %v1308 = vpack.c.b16 %v1260, %v1258
      %v1309 = vpack.c.b16 %v1261, %v1259
      %v1310 = vpack.c.b16 %v1264, %v1262
      %v1311 = vpack.c.b16 %v1265, %v1263
      %v1312 = vpack.c.b16 %v1268, %v1266
      %v1313 = vpack.c.b16 %v1269, %v1267
      %v1314 = vpack.c.b16 %v1272, %v1270
      %v1315 = vpack.c.b16 %v1273, %v1271
      %v1316 = vpack.c.b16 %v1276, %v1274
      %v1317 = vpack.c.b16 %v1277, %v1275
      %v1318 = vpack.c.b16 %v1280, %v1278
      %v1319 = vpack.c.b16 %v1281, %v1279
      %v1320 = vpack.c.b16 %v1284, %v1282
      %v1321 = vpack.c.b16 %v1285, %v1283
      %v1322 = vpack.c.b16 %v1288, %v1286
      %v1323 = vpack.c.b16 %v1289, %v1287
      %v1324 = vpack.c.b16 %v1292, %v1290
      %v1325 = vpack.c.b16 %v1293, %v1291
      %v1390 = vunpack.c.l.b16 %v1133
      %v1391 = vunpack.c.l.b16 %v1134
      %v1392 = vunpack.c.l.b16 %v1135
      %v1393 = vunpack.c.l.b16 %v1136
      %v1394 = vunpack.c.l.b16 %v1137
      %v1395 = vunpack.c.l.b16 %v1138
      %v1396 = vunpack.c.l.b16 %v1139
      %v1397 = vunpack.c.l.b16 %v1140
      %v1398 = vunpack.c.l.b16 %v1141
      %v1399 = vunpack.c.l.b16 %v1142
      %v1400 = vunpack.c.l.b16 %v1143
      %v1401 = vunpack.c.l.b16 %v1144
      %v1402 = vunpack.c.l.b16 %v1145
      %v1403 = vunpack.c.l.b16 %v1146
      %v1404 = vunpack.c.l.b16 %v1147
      %v1405 = vunpack.c.l.b16 %v1148
      %v1406 = vunpack.c.l.b16 %v1149
      %v1407 = vunpack.c.l.b16 %v1150
      %v1408 = vunpack.c.l.b16 %v1151
      %v1409 = vunpack.c.l.b16 %v1152
      %v1410 = vunpack.c.l.b16 %v1153
      %v1411 = vunpack.c.l.b16 %v1154
      %v1412 = vunpack.c.l.b16 %v1155
      %v1413 = vunpack.c.l.b16 %v1156
      %v1414 = vunpack.c.l.b16 %v1157
      %v1415 = vunpack.c.l.b16 %v1158
      %v1416 = vunpack.c.l.b16 %v1159
      %v1417 = vunpack.c.l.b16 %v1160
      %v1418 = vunpack.c.l.b16 %v1161
      %v1419 = vunpack.c.l.b16 %v1162
      %v1420 = vunpack.c.l.b16 %v1163
      %v1421 = vunpack.c.l.b16 %v1164
      %v1422 = vpack.c.b16 %v1391, %v1390
      %v1423 = vpack.c.b16 %v1393, %v1392
      %v1424 = vpack.c.b16 %v1395, %v1394
      %v1425 = vpack.c.b16 %v1397, %v1396
      %v1426 = vpack.c.b16 %v1399, %v1398
      %v1427 = vpack.c.b16 %v1401, %v1400
      %v1428 = vpack.c.b16 %v1403, %v1402
      %v1429 = vpack.c.b16 %v1405, %v1404
      %v1430 = vpack.c.b16 %v1407, %v1406
      %v1431 = vpack.c.b16 %v1409, %v1408
      %v1432 = vpack.c.b16 %v1411, %v1410
      %v1433 = vpack.c.b16 %v1413, %v1412
      %v1434 = vpack.c.b16 %v1415, %v1414
      %v1435 = vpack.c.b16 %v1417, %v1416
      %v1436 = vpack.c.b16 %v1419, %v1418
      %v1437 = vpack.c.b16 %v1421, %v1420
      %1454 = vmatprep.subr.bf16.mxu0 0
      %1455 = vmatpush1.bf16.msra.mxu0 %v1429
      %1456 = vmatprep.subr.bf16.mxu0 0
      %1457 = vmatpush1.bf16.msra.mxu0 %v1428
      %1458 = vmatprep.subr.bf16.mxu0 0
      %1459 = vmatpush1.bf16.msra.mxu0 %v1427
      %1460 = vmatprep.subr.bf16.mxu0 0
      %1461 = vmatpush1.bf16.msra.mxu0 %v1426
      %1462 = vmatprep.subr.bf16.mxu0 0
      %1463 = vmatpush1.bf16.msra.mxu0 %v1425
      %1464 = vmatprep.subr.bf16.mxu0 0
      %1465 = vmatpush1.bf16.msra.mxu0 %v1424
      %1466 = vmatprep.subr.bf16.mxu0 0
      %1467 = vmatpush1.bf16.msra.mxu0 %v1423
      %1468 = vmatprep.subr.bf16.mxu0 0
      %1469 = vmatpush1.bf16.msra.mxu0 %v1422
      %1470 = vmatprep.subr.bf16.mxu0 0
      %1471 = vmatpush2.bf16.msra.mxu0 %v1437
      %1472 = vmatprep.subr.bf16.mxu0 0
      %1473 = vmatpush2.bf16.msra.mxu0 %v1436
      %1474 = vmatprep.subr.bf16.mxu0 0
      %1475 = vmatpush2.bf16.msra.mxu0 %v1435
      %1476 = vmatprep.subr.bf16.mxu0 0
      %1477 = vmatpush2.bf16.msra.mxu0 %v1434
      %1478 = vmatprep.subr.bf16.mxu0 0
      %1479 = vmatpush2.bf16.msra.mxu0 %v1433
      %1480 = vmatprep.subr.bf16.mxu0 0
      %1481 = vmatpush2.bf16.msra.mxu0 %v1432
      %1482 = vmatprep.subr.bf16.mxu0 0
      %1483 = vmatpush2.bf16.msra.mxu0 %v1431
      %1484 = vmatprep.subr.bf16.mxu0 0
      %1485 = vmatpush2.bf16.msra.mxu0 %v1430
      %1486 = vmatprep.mubr.bf16.mxu0 %v1295
      %1487 = vmatmul.mubr.bf16.gmra.mxu0 %v1294
      %v1488 = vpop.f32.mrf.mxu0
      %v1489 = vadd.f32 %v1166, %v1488
      %v1490 = vpop.f32.mrf.mxu0
      %v1491 = vpop.f32.mrf.mxu0
      %v1492 = vadd.f32 %v1167, %v1491
      %v1493 = vpop.f32.mrf.mxu0
      %1494 = vmatprep.mubr.bf16.mxu0 %v1297
      %1495 = vmatmul.mubr.bf16.gmra.mxu0 %v1296
      %v1496 = vpop.f32.mrf.mxu0
      %v1497 = vadd.f32 %v1168, %v1496
      %v1498 = vpop.f32.mrf.mxu0
      %v1499 = vpop.f32.mrf.mxu0
      %v1500 = vadd.f32 %v1169, %v1499
      %v1501 = vpop.f32.mrf.mxu0
      %1502 = vmatprep.mubr.bf16.mxu0 %v1299
      %1503 = vmatmul.mubr.bf16.gmra.mxu0 %v1298
      %v1504 = vpop.f32.mrf.mxu0
      %v1505 = vadd.f32 %v1170, %v1504
      %v1506 = vpop.f32.mrf.mxu0
      %v1507 = vpop.f32.mrf.mxu0
      %v1508 = vadd.f32 %v1171, %v1507
      %v1509 = vpop.f32.mrf.mxu0
      %1510 = vmatprep.mubr.bf16.mxu0 %v1301
      %1511 = vmatmul.mubr.bf16.gmra.mxu0 %v1300
      %v1512 = vpop.f32.mrf.mxu0
      %v1513 = vadd.f32 %v1172, %v1512
      %v1514 = vpop.f32.mrf.mxu0
      %v1515 = vpop.f32.mrf.mxu0
      %v1516 = vadd.f32 %v1173, %v1515
      %v1517 = vpop.f32.mrf.mxu0
      %1518 = vmatprep.mubr.bf16.mxu0 %v1303
      %1519 = vmatmul.mubr.bf16.gmra.mxu0 %v1302
      %v1520 = vpop.f32.mrf.mxu0
      %v1521 = vadd.f32 %v1174, %v1520
      %v1522 = vpop.f32.mrf.mxu0
      %v1523 = vpop.f32.mrf.mxu0
      %v1524 = vadd.f32 %v1175, %v1523
      %v1525 = vpop.f32.mrf.mxu0
      %1526 = vmatprep.mubr.bf16.mxu0 %v1305
      %1527 = vmatmul.mubr.bf16.gmra.mxu0 %v1304
      %v1528 = vpop.f32.mrf.mxu0
      %v1529 = vadd.f32 %v1176, %v1528
      %v1530 = vpop.f32.mrf.mxu0
      %v1531 = vpop.f32.mrf.mxu0
      %v1532 = vadd.f32 %v1177, %v1531
      %v1533 = vpop.f32.mrf.mxu0
      %1534 = vmatprep.mubr.bf16.mxu0 %v1307
      %1535 = vmatmul.mubr.bf16.gmra.mxu0 %v1306
      %v1536 = vpop.f32.mrf.mxu0
      %v1537 = vadd.f32 %v1178, %v1536
      %v1538 = vpop.f32.mrf.mxu0
      %v1539 = vpop.f32.mrf.mxu0
      %v1540 = vadd.f32 %v1179, %v1539
      %v1541 = vpop.f32.mrf.mxu0
      %1542 = vmatprep.mubr.bf16.mxu0 %v1309
      %1543 = vmatmul.mubr.bf16.gmra.mxu0 %v1308
      %v1544 = vpop.f32.mrf.mxu0
      %v1545 = vadd.f32 %v1180, %v1544
      %v1546 = vpop.f32.mrf.mxu0
      %v1547 = vpop.f32.mrf.mxu0
      %v1548 = vadd.f32 %v1181, %v1547
      %v1549 = vpop.f32.mrf.mxu0
      %1550 = vmatprep.mubr.bf16.mxu0 %v1311
      %1551 = vmatmul.mubr.bf16.gmra.mxu0 %v1310
      %v1552 = vpop.f32.mrf.mxu0
      %v1553 = vadd.f32 %v1182, %v1552
      %v1554 = vpop.f32.mrf.mxu0
      %v1555 = vpop.f32.mrf.mxu0
      %v1556 = vadd.f32 %v1183, %v1555
      %v1557 = vpop.f32.mrf.mxu0
      %1558 = vmatprep.mubr.bf16.mxu0 %v1313
      %1559 = vmatmul.mubr.bf16.gmra.mxu0 %v1312
      %v1560 = vpop.f32.mrf.mxu0
      %v1561 = vadd.f32 %v1184, %v1560
      %v1562 = vpop.f32.mrf.mxu0
      %v1563 = vpop.f32.mrf.mxu0
      %v1564 = vadd.f32 %v1185, %v1563
      %v1565 = vpop.f32.mrf.mxu0
      %1566 = vmatprep.mubr.bf16.mxu0 %v1315
      %1567 = vmatmul.mubr.bf16.gmra.mxu0 %v1314
      %v1568 = vpop.f32.mrf.mxu0
      %v1569 = vadd.f32 %v1186, %v1568
      %v1570 = vpop.f32.mrf.mxu0
      %v1571 = vpop.f32.mrf.mxu0
      %v1572 = vadd.f32 %v1187, %v1571
      %v1573 = vpop.f32.mrf.mxu0
      %1574 = vmatprep.mubr.bf16.mxu0 %v1317
      %1575 = vmatmul.mubr.bf16.gmra.mxu0 %v1316
      %v1576 = vpop.f32.mrf.mxu0
      %v1577 = vadd.f32 %v1188, %v1576
      %v1578 = vpop.f32.mrf.mxu0
      %v1579 = vpop.f32.mrf.mxu0
      %v1580 = vadd.f32 %v1189, %v1579
      %v1581 = vpop.f32.mrf.mxu0
      %1582 = vmatprep.mubr.bf16.mxu0 %v1319
      %1583 = vmatmul.mubr.bf16.gmra.mxu0 %v1318
      %v1584 = vpop.f32.mrf.mxu0
      %v1585 = vadd.f32 %v1190, %v1584
      %v1586 = vpop.f32.mrf.mxu0
      %v1587 = vpop.f32.mrf.mxu0
      %v1588 = vadd.f32 %v1191, %v1587
      %v1589 = vpop.f32.mrf.mxu0
      %1590 = vmatprep.mubr.bf16.mxu0 %v1321
      %1591 = vmatmul.mubr.bf16.gmra.mxu0 %v1320
      %v1592 = vpop.f32.mrf.mxu0
      %v1593 = vadd.f32 %v1192, %v1592
      %v1594 = vpop.f32.mrf.mxu0
      %v1595 = vpop.f32.mrf.mxu0
      %v1596 = vadd.f32 %v1193, %v1595
      %v1597 = vpop.f32.mrf.mxu0
      %1598 = vmatprep.mubr.bf16.mxu0 %v1323
      %1599 = vmatmul.mubr.bf16.gmra.mxu0 %v1322
      %v1600 = vpop.f32.mrf.mxu0
      %v1601 = vadd.f32 %v1194, %v1600
      %v1602 = vpop.f32.mrf.mxu0
      %v1603 = vpop.f32.mrf.mxu0
      %v1604 = vadd.f32 %v1195, %v1603
      %v1605 = vpop.f32.mrf.mxu0
      %1606 = vmatprep.mubr.bf16.mxu0 %v1325
      %1607 = vmatmul.mubr.bf16.gmra.mxu0 %v1324
      %v1608 = vpop.f32.mrf.mxu0
      %v1609 = vadd.f32 %v1196, %v1608
      %v1610 = vpop.f32.mrf.mxu0
      %v1611 = vpop.f32.mrf.mxu0
      %v1612 = vadd.f32 %v1197, %v1611
      %v1613 = vpop.f32.mrf.mxu0
      %1614 = vdwg.mxu0
      %v1615 = vpack.c.bf16 %v1492, %v1489
      %v1616 = vpack.c.bf16 %v1500, %v1497
      %v1617 = vpack.c.bf16 %v1508, %v1505
      %v1618 = vpack.c.bf16 %v1516, %v1513
      %v1619 = vpack.c.bf16 %v1524, %v1521
      %v1620 = vpack.c.bf16 %v1532, %v1529
      %v1621 = vpack.c.bf16 %v1540, %v1537
      %v1622 = vpack.c.bf16 %v1548, %v1545
      %v1623 = vpack.c.bf16 %v1556, %v1553
      %v1624 = vpack.c.bf16 %v1564, %v1561
      %v1625 = vpack.c.bf16 %v1572, %v1569
      %v1626 = vpack.c.bf16 %v1580, %v1577
      %v1627 = vpack.c.bf16 %v1588, %v1585
      %v1628 = vpack.c.bf16 %v1596, %v1593
      %v1629 = vpack.c.bf16 %v1604, %v1601
      %v1630 = vpack.c.bf16 %v1612, %v1609
      %v1647 = vunpack.c.l.b16 %v1615
      %v1648 = vunpack.c.h.b16 %v1615
      %v1649 = vunpack.c.l.b16 %v1616
      %v1650 = vunpack.c.h.b16 %v1616
      %v1651 = vunpack.c.l.b16 %v1617
      %v1652 = vunpack.c.h.b16 %v1617
      %v1653 = vunpack.c.l.b16 %v1618
      %v1654 = vunpack.c.h.b16 %v1618
      %v1655 = vunpack.c.l.b16 %v1619
      %v1656 = vunpack.c.h.b16 %v1619
      %v1657 = vunpack.c.l.b16 %v1620
      %v1658 = vunpack.c.h.b16 %v1620
      %v1659 = vunpack.c.l.b16 %v1621
      %v1660 = vunpack.c.h.b16 %v1621
      %v1661 = vunpack.c.l.b16 %v1622
      %v1662 = vunpack.c.h.b16 %v1622
      %v1663 = vunpack.c.l.b16 %v1623
      %v1664 = vunpack.c.h.b16 %v1623
      %v1665 = vunpack.c.l.b16 %v1624
      %v1666 = vunpack.c.h.b16 %v1624
      %v1667 = vunpack.c.l.b16 %v1625
      %v1668 = vunpack.c.h.b16 %v1625
      %v1669 = vunpack.c.l.b16 %v1626
      %v1670 = vunpack.c.h.b16 %v1626
      %v1671 = vunpack.c.l.b16 %v1627
      %v1672 = vunpack.c.h.b16 %v1627
      %v1673 = vunpack.c.l.b16 %v1628
      %v1674 = vunpack.c.h.b16 %v1628
      %v1675 = vunpack.c.l.b16 %v1629
      %v1676 = vunpack.c.h.b16 %v1629
      %v1677 = vunpack.c.l.b16 %v1630
      %v1678 = vunpack.c.h.b16 %v1630
      %v1679 = vpack.c.b16 %v1647, %v1647
      %v1680 = vpack.c.b16 %v1648, %v1648
      %v1681 = vpack.c.b16 %v1649, %v1649
      %v1682 = vpack.c.b16 %v1650, %v1650
      %v1683 = vpack.c.b16 %v1651, %v1651
      %v1684 = vpack.c.b16 %v1652, %v1652
      %v1685 = vpack.c.b16 %v1653, %v1653
      %v1686 = vpack.c.b16 %v1654, %v1654
      %v1687 = vpack.c.b16 %v1655, %v1655
      %v1688 = vpack.c.b16 %v1656, %v1656
      %v1689 = vpack.c.b16 %v1657, %v1657
      %v1690 = vpack.c.b16 %v1658, %v1658
      %v1691 = vpack.c.b16 %v1659, %v1659
      %v1692 = vpack.c.b16 %v1660, %v1660
      %v1693 = vpack.c.b16 %v1661, %v1661
      %v1694 = vpack.c.b16 %v1662, %v1662
      %v1695 = vpack.c.b16 %v1663, %v1663
      %v1696 = vpack.c.b16 %v1664, %v1664
      %v1697 = vpack.c.b16 %v1665, %v1665
      %v1698 = vpack.c.b16 %v1666, %v1666
      %v1699 = vpack.c.b16 %v1667, %v1667
      %v1700 = vpack.c.b16 %v1668, %v1668
      %v1701 = vpack.c.b16 %v1669, %v1669
      %v1702 = vpack.c.b16 %v1670, %v1670
      %v1703 = vpack.c.b16 %v1671, %v1671
      %v1704 = vpack.c.b16 %v1672, %v1672
      %v1705 = vpack.c.b16 %v1673, %v1673
      %v1706 = vpack.c.b16 %v1674, %v1674
      %v1707 = vpack.c.b16 %v1675, %v1675
      %v1708 = vpack.c.b16 %v1676, %v1676
      %v1709 = vpack.c.b16 %v1677, %v1677
      %v1710 = vpack.c.b16 %v1678, %v1678
      %s1743 = smul.u32 %s1090, 32
      %s1744 = sadd.s32 %s1093, %s1743
      %s1745 = smul.addr %s1744, 4
      %s1746 = scalar_lea.vmem [#allocation3], %s1745
      %1747 = vst [vmem:[%s1746] sm:$0xf] %v1679
      %1748 = vst [vmem:[%s1746 + $0x4] sm:$0xf] %v1680
      %1749 = vst [vmem:[%s1746 + $0x8] sm:$0xf] %v1681
      %1750 = vst [vmem:[%s1746 + $0xc] sm:$0xf] %v1682
      %1751 = vst [vmem:[%s1746 + $0x10] sm:$0xf] %v1683
      %1752 = vst [vmem:[%s1746 + $0x14] sm:$0xf] %v1684
      %1753 = vst [vmem:[%s1746 + $0x18] sm:$0xf] %v1685
      %1754 = vst [vmem:[%s1746 + $0x1c] sm:$0xf] %v1686
      %1755 = vst [vmem:[%s1746 + $0x20] sm:$0xf] %v1687
      %1756 = vst [vmem:[%s1746 + $0x24] sm:$0xf] %v1688
      %1757 = vst [vmem:[%s1746 + $0x28] sm:$0xf] %v1689
      %1758 = vst [vmem:[%s1746 + $0x2c] sm:$0xf] %v1690
      %1759 = vst [vmem:[%s1746 + $0x30] sm:$0xf] %v1691
      %1760 = vst [vmem:[%s1746 + $0x34] sm:$0xf] %v1692
      %1761 = vst [vmem:[%s1746 + $0x38] sm:$0xf] %v1693
      %1762 = vst [vmem:[%s1746 + $0x3c] sm:$0xf] %v1694
      %1763 = vst [vmem:[%s1746 + $0x40] sm:$0xf] %v1695
      %1764 = vst [vmem:[%s1746 + $0x44] sm:$0xf] %v1696
      %1765 = vst [vmem:[%s1746 + $0x48] sm:$0xf] %v1697
      %1766 = vst [vmem:[%s1746 + $0x4c] sm:$0xf] %v1698
      %1767 = vst [vmem:[%s1746 + $0x50] sm:$0xf] %v1699
      %1768 = vst [vmem:[%s1746 + $0x54] sm:$0xf] %v1700
      %1769 = vst [vmem:[%s1746 + $0x58] sm:$0xf] %v1701
      %1770 = vst [vmem:[%s1746 + $0x5c] sm:$0xf] %v1702
      %1771 = vst [vmem:[%s1746 + $0x60] sm:$0xf] %v1703
      %1772 = vst [vmem:[%s1746 + $0x64] sm:$0xf] %v1704
      %1773 = vst [vmem:[%s1746 + $0x68] sm:$0xf] %v1705
      %1774 = vst [vmem:[%s1746 + $0x6c] sm:$0xf] %v1706
      %1775 = vst [vmem:[%s1746 + $0x70] sm:$0xf] %v1707
      %1776 = vst [vmem:[%s1746 + $0x74] sm:$0xf] %v1708
      %1777 = vst [vmem:[%s1746 + $0x78] sm:$0xf] %v1709
      %1778 = vst [vmem:[%s1746 + $0x7c] sm:$0xf] %v1710
      %p1779 = scmp.eq.s32.totalorder %s21, 2
      %p1780 = pnand %p455, %p1779
      %p1781 = pneg %p1780
      // Predicated region
      $region105: #{model_forward.1} parent=27 // pred_check
        _
      $region106: #{model_forward.1} parent=27 // pred_check_branch
        %1783 = sbr.rel (%p1780) target = $region108
      $region107: #{model_forward.1} parent=27 // pred_region
        %s1784 = scalar_lea.vmem %s4, %s1092
        %1785 = vst [vmem:[%s1784] sm:$0xff] %v1489
        %1786 = vst [vmem:[%s1784 + $0x8] sm:$0xff] %v1492
        %1787 = vst [vmem:[%s1784 + $0x10] sm:$0xff] %v1497
        %1788 = vst [vmem:[%s1784 + $0x18] sm:$0xff] %v1500
        %1789 = vst [vmem:[%s1784 + $0x20] sm:$0xff] %v1505
        %1790 = vst [vmem:[%s1784 + $0x28] sm:$0xff] %v1508
        %1791 = vst [vmem:[%s1784 + $0x30] sm:$0xff] %v1513
        %1792 = vst [vmem:[%s1784 + $0x38] sm:$0xff] %v1516
        %1793 = vst [vmem:[%s1784 + $0x40] sm:$0xff] %v1521
        %1794 = vst [vmem:[%s1784 + $0x48] sm:$0xff] %v1524
        %1795 = vst [vmem:[%s1784 + $0x50] sm:$0xff] %v1529
        %1796 = vst [vmem:[%s1784 + $0x58] sm:$0xff] %v1532
        %1797 = vst [vmem:[%s1784 + $0x60] sm:$0xff] %v1537
        %1798 = vst [vmem:[%s1784 + $0x68] sm:$0xff] %v1540
        %1799 = vst [vmem:[%s1784 + $0x70] sm:$0xff] %v1545
        %1800 = vst [vmem:[%s1784 + $0x78] sm:$0xff] %v1548
        %1801 = vst [vmem:[%s1784 + $0x80] sm:$0xff] %v1553
        %1802 = vst [vmem:[%s1784 + $0x88] sm:$0xff] %v1556
        %1803 = vst [vmem:[%s1784 + $0x90] sm:$0xff] %v1561
        %1804 = vst [vmem:[%s1784 + $0x98] sm:$0xff] %v1564
        %1805 = vst [vmem:[%s1784 + $0xa0] sm:$0xff] %v1569
        %1806 = vst [vmem:[%s1784 + $0xa8] sm:$0xff] %v1572
        %1807 = vst [vmem:[%s1784 + $0xb0] sm:$0xff] %v1577
        %1808 = vst [vmem:[%s1784 + $0xb8] sm:$0xff] %v1580
        %1809 = vst [vmem:[%s1784 + $0xc0] sm:$0xff] %v1585
        %1810 = vst [vmem:[%s1784 + $0xc8] sm:$0xff] %v1588
        %1811 = vst [vmem:[%s1784 + $0xd0] sm:$0xff] %v1593
        %1812 = vst [vmem:[%s1784 + $0xd8] sm:$0xff] %v1596
        %1813 = vst [vmem:[%s1784 + $0xe0] sm:$0xff] %v1601
        %1814 = vst [vmem:[%s1784 + $0xe8] sm:$0xff] %v1604
        %1815 = vst [vmem:[%s1784 + $0xf0] sm:$0xff] %v1609
        %1816 = vst [vmem:[%s1784 + $0xf8] sm:$0xff] %v1612
      $region108: #{model_forward.1} parent=27 // pred_fallthru
        _
      // Predicated region
      $region109: #{model_forward.1} parent=27 // pred_check
        %p1817 = pneg %p89
      $region110: #{model_forward.1} parent=27 // pred_check_branch
        %1819 = sbr.rel (%p1817) target = $region112
      $region111: #{model_forward.1} parent=27 // pred_region
        _
      $region112: #{model_forward.1} parent=27 // pred_fallthru
        _
      // Predicated region
      $region113: #{model_forward.1} parent=27 // pred_check
        %p1820 = pneg %p89
      $region114: #{model_forward.1} parent=27 // pred_check_branch
        %1822 = sbr.rel (%p1820) target = $region116
      $region115: #{model_forward.1} parent=27 // pred_region
        _
      $region116: #{model_forward.1} parent=27 // pred_fallthru
        _
    $region28: #{model_forward.1} parent=5 // pred_fallthru
      _
    %p1823 = scmp.le.s32.totalorder 2, %s10
    // Predicated region
    $region117: #{model_forward.1} parent=5 // pred_check
      %p1824 = pneg %p1823
    $region118: #{model_forward.1} parent=5 // pred_check_branch
      %1826 = sbr.rel (%p1824) target = $region120
    $region119: #{model_forward.1} parent=5 // pred_region
      %s1827 = ssub.s32 %s10, 2
    $region120: #{model_forward.1} parent=5 // pred_fallthru
      _
  $region6: #{model_forward.1} parent=0 // loop_footer
    %s14 = sadd.s32 1, %s10
  $region7: #{model_forward.1} parent=0 // loop_footer_branch
    %9 = sbr.rel target = $region3
  $region8: #{model_forward.1} parent=0 // loop_exit
    _
  %1828 = vsyncmov [#allocation5]
  %s1829 = vpop.sfrf %1828
  %p1830 = scmp.eq.s32.totalorder %s1829, 0
  %p1831 = pneg %p1830
  %1833 = shalt.err (%p1831)
  %s1834 = scalar_lea.sflag [#allocation5], 1
  %1835 = vsyncmov %s1834
  %s1836 = vpop.sfrf %1835
  %p1837 = scmp.eq.s32.totalorder %s1836, 0
  %p1838 = pneg %p1837
  %1840 = shalt.err (%p1838)

</llo_original>
